<compile_context>
chip_gen: v5e
topology: v5e:2x2
jax: 0.10.0
libtpu: 0.0.40
codegen_flags: <defaults>
</compile_context>

<pallas_src>
import functools

import jax
import jax.numpy as jnp
from jax import lax
from jax.experimental import pallas as pl
from jax.experimental.pallas import tpu as pltpu

block_size = 256
n_embd = 384


def head_kernel(x_ref, wqkv_ref, bqkv_ref, o_ref, *, tq):
    Bt, T, C = x_ref.shape
    H = o_ref.shape[-1]

    # --- Fused QKV projection: one bf16 matmul with f32 accumulation. ---
    # (1/sqrt(H) is pre-folded into Wq / bq by the wrapper.)
    x2d = x_ref[...].astype(jnp.bfloat16).reshape(Bt * T, C)
    qkv = jnp.dot(x2d, wqkv_ref[...],
                  preferred_element_type=jnp.float32)         # (Bt*T, 3H) f32
    qkv = (qkv + bqkv_ref[...]).astype(jnp.bfloat16)          # bias in f32, one cast

    q = qkv[:, 0 * H:1 * H].reshape(Bt, T, H)
    k = qkv[:, 1 * H:2 * H].reshape(Bt, T, H)
    v = qkv[:, 2 * H:3 * H].reshape(Bt, T, H)

    # --- Causal attention tiled over q rows. For q tile qi the kv prefix length
    # lkv = (qi+1)*tq is STATIC, so each tile is a plain (non-online) softmax and
    # fully-masked kv blocks above the diagonal are simply never computed.
    n_q = T // tq
    for qi in range(n_q):
        lkv = (qi + 1) * tq
        q_i = q[:, qi * tq:(qi + 1) * tq, :]                  # (Bt, tq, H)  bf16
        k_i = k[:, :lkv, :]                                   # (Bt, lkv, H) bf16
        v_i = v[:, :lkv, :]

        # Scores: contract head dim directly (no explicit transpose of k).
        s = jnp.einsum('bqd,bkd->bqk', q_i, k_i,
                       preferred_element_type=jnp.float32)    # (Bt, tq, lkv) f32

        # 2-D causal mask, broadcast over the batch block; only the trailing
        # diagonal tq x tq columns can actually be masked (diagonal stays
        # unmasked -> no all-(-inf) rows).
        row = lax.broadcasted_iota(jnp.int32, (tq, lkv), 0)
        col = lax.broadcasted_iota(jnp.int32, (tq, lkv), 1)
        s = jnp.where((col <= row + qi * tq)[None], s, -jnp.inf)

        # Numerically-stable softmax (f32 on VPU/EUP); reciprocal uses the EUP slot.
        s = s - jnp.max(s, axis=-1, keepdims=True)
        p = jnp.exp(s)
        p = p * pl.reciprocal(jnp.sum(p, axis=-1, keepdims=True), approx=True)

        # TODO(synk): dropout(p=0.2) on `p` in training mode.

        out_i = jnp.einsum('bqk,bkd->bqd', p.astype(jnp.bfloat16), v_i,
                           preferred_element_type=jnp.float32)
        o_ref[:, pl.ds(qi * tq, tq), :] = out_i.astype(o_ref.dtype)


def _tpu_topology():
    """Returns (tensorcores_per_chip, vmem_limit_bytes or None) from the device kind."""
    try:
        kind = jax.devices()[0].device_kind.lower()
    except Exception:
        kind = ""
    if "v7" in kind:
        return 2, 48 * 1024 * 1024          # 2 TCs/chip, 64 MiB VMEM per TC
    if "v5" in kind or "v6" in kind:
        return 1, 64 * 1024 * 1024          # 1 TC, 128 MiB physical VMEM
    return 1, None                          # unknown: keep compiler defaults


def _kernel_vmem_bytes(bt, T, C, H, tq):
    """Rough upper bound on live VMEM for one grid step (bytes)."""
    f32, bf16 = 4, 2
    x_blocks = 2 * bt * T * C * f32              # double-buffered f32 input block
    o_blocks = 2 * bt * T * H * f32              # double-buffered f32 output block
    weights = 2 * (C * 3 * H * bf16 + 3 * H * f32)
    x_cast = bt * T * C * bf16                   # in-kernel bf16 copy of x
    qkv = bt * T * 3 * H * (f32 + bf16)          # f32 result + bf16 copy
    attn = bt * tq * T * (2 * f32 + bf16)        # s, p (f32) + p (bf16), worst tile
    return x_blocks + o_blocks + weights + x_cast + qkv + attn


def _pick_batch_block(B, T, C, H, tq, n_cores, vmem_limit):
    """Largest batch block in {1,2,4,8} dividing B that keeps >=2 grid steps per
    TensorCore (DMA/compute overlap; >=4 programs on v7x) and fits the VMEM budget."""
    budget = int(0.7 * (vmem_limit if vmem_limit else 16 * 1024 * 1024))
    min_programs = 2 * n_cores
    cands = [bt for bt in (8, 4, 2, 1) if B % bt == 0]
    for bt in cands:
        if B // bt >= min_programs and _kernel_vmem_bytes(bt, T, C, H, tq) <= budget:
            return bt
    for bt in cands:                              # tiny B: give up on overlap, keep VMEM
        if _kernel_vmem_bytes(bt, T, C, H, tq) <= budget:
            return bt
    return 1


def head_forward(x, wq, bq, wk, bk, wv, bv):
    """x: (B, T, C) float32; weights (C, H); biases (1, H). Returns (B, T, H) float32."""
    B, T, C = x.shape
    H = wq.shape[1]
    assert T <= block_size and C == n_embd
    assert T % 8 == 0

    tq = 64 if (T % 64 == 0 and T > 64) else T   # causal q-tile (static)
    n_cores, vmem_limit = _tpu_topology()
    bt = _pick_batch_block(B, T, C, H, tq, n_cores, vmem_limit)

    # Fold the attention scale into the query projection; fuse QKV params.
    scale = H ** -0.5
    w_qkv = jnp.concatenate([wq * scale, wk, wv], axis=1).astype(jnp.bfloat16)  # (C, 3H)
    b_qkv = jnp.concatenate([bq * scale, bk, bv], axis=1).astype(jnp.float32)   # (1, 3H)

    return pl.pallas_call(
        functools.partial(head_kernel, tq=tq),
        out_shape=jax.ShapeDtypeStruct((B, T, H), jnp.float32),
        grid_spec=pltpu.PrefetchScalarGridSpec(
            num_scalar_prefetch=0,
            grid=(B // bt,),
            in_specs=[
                pl.BlockSpec((bt, T, C), lambda b: (b, 0, 0)),    # x (f32, cast in-kernel)
                pl.BlockSpec((C, 3 * H), lambda b: (0, 0)),       # fused W_qkv (bf16)
                pl.BlockSpec((1, 3 * H), lambda b: (0, 0)),       # fused bias (f32)
            ],
            out_specs=pl.BlockSpec((bt, T, H), lambda b: (b, 0, 0)),
        ),
        compiler_params=pltpu.CompilerParams(
            dimension_semantics=("parallel",),
            vmem_limit_bytes=vmem_limit),
    )(x, w_qkv, b_qkv)


def head_reference(x, wq, bq, wk, bk, wv, bv):
    q = x @ wq + bq
    k = x @ wk + bk
    v = x @ wv + bv
    H = wq.shape[1]
    w = (q @ jnp.swapaxes(k, -2, -1)) * H ** (-0.5)
    T = x.shape[1]
    mask = jnp.tril(jnp.ones((T, T), dtype=bool))
    w = jnp.where(mask, w, -jnp.inf)
    w = jax.nn.softmax(w, axis=-1)
    return w @ v


if __name__ == "__main__":
    B, T, C, head_size = 4, 128, n_embd, 64

    key = jax.random.PRNGKey(0)
    kx, kq, kbq, kk, kbk, kv, kbv = jax.random.split(key, 7)

    scale = 1.0 / (C ** 0.5)  # deterministic, roughly nn.Linear-like init
    x = jax.random.normal(kx, (B, T, C), dtype=jnp.float32)
    wq = jax.random.uniform(kq, (C, head_size), jnp.float32, -scale, scale)
    bq = jax.random.uniform(kbq, (1, head_size), jnp.float32, -scale, scale)
    wk = jax.random.uniform(kk, (C, head_size), jnp.float32, -scale, scale)
    bk = jax.random.uniform(kbk, (1, head_size), jnp.float32, -scale, scale)
    wv = jax.random.uniform(kv, (C, head_size), jnp.float32, -scale, scale)
    bv = jax.random.uniform(kbv, (1, head_size), jnp.float32, -scale, scale)

    out = head_forward(x, wq, bq, wk, bk, wv, bv)
    out = jax.block_until_ready(out)

    ref = head_reference(x, wq, bq, wk, bk, wv, bv)
    assert out.shape == (B, T, head_size)
    # bf16 MXU operands + approx reciprocal -> loosened tolerance vs fp32 reference.
    max_err = float(jnp.max(jnp.abs(out - ref)))
    assert jnp.allclose(out, ref, atol=2e-2, rtol=2e-2), (
        f"mismatch vs reference, max abs err {max_err}")

    print("KERNEL_OK")
</pallas_src>

<mosaic_0001>
module attributes {stable_mosaic.version = 11 : i64} {
  func.func @head_kernel(%arg0: i32, %arg1: memref<2x128x384xf32, #tpu.memory_space<vmem>>, %arg2: memref<384x192xbf16, #tpu.memory_space<vmem>>, %arg3: memref<1x192xf32, #tpu.memory_space<vmem>>, %arg4: memref<2x128x64xf32, #tpu.memory_space<vmem>>) attributes {dimension_semantics = [#tpu.dimension_semantics<parallel>], iteration_bounds = array<i64: 2>, scalar_prefetch = 0 : i64, scratch_operands = 0 : i64, tpu.core_type = #tpu.core_type<tc>, window_params = [{transform_indices = @transform_0, window_bounds = array<i64: 2, 128, 384>}, {pipeline_mode = #tpu.pipeline_mode<synchronous>, transform_indices = @transform_1, window_bounds = array<i64: 384, 192>}, {pipeline_mode = #tpu.pipeline_mode<synchronous>, transform_indices = @transform_2, window_bounds = array<i64: 1, 192>}, {transform_indices = @transform_3, window_bounds = array<i64: 2, 128, 64>}]} {
    %c0 = arith.constant 0 : index
    %c0_0 = arith.constant 0 : index
    %c0_1 = arith.constant 0 : index
    %0 = vector.load %arg1[%c0, %c0_0, %c0_1] : memref<2x128x384xf32, #tpu.memory_space<vmem>>, vector<2x128x384xf32>
    %1 = arith.truncf %0 : vector<2x128x384xf32> to vector<2x128x384xbf16>
    %2 = vector.shape_cast %1 : vector<2x128x384xbf16> to vector<256x384xbf16>
    %c0_2 = arith.constant 0 : index
    %c0_3 = arith.constant 0 : index
    %3 = vector.load %arg2[%c0_2, %c0_3] : memref<384x192xbf16, #tpu.memory_space<vmem>>, vector<384x192xbf16>
    %cst = arith.constant dense<0.000000e+00> : vector<256x192xf32>
    %4 = tpu.matmul %2, %3, %cst {dimension_numbers = #tpu.dot_dimension_numbers<[1], [0], [0], [1], [0, 0, 1, 1], [], []>} : vector<256x384xbf16>, vector<384x192xbf16>, vector<256x192xf32> -> vector<256x192xf32>
    %c0_4 = arith.constant 0 : index
    %c0_5 = arith.constant 0 : index
    %5 = vector.load %arg3[%c0_4, %c0_5] : memref<1x192xf32, #tpu.memory_space<vmem>>, vector<1x192xf32>
    %6 = vector.broadcast %5 : vector<1x192xf32> to vector<256x192xf32>
    %7 = arith.addf %4, %6 : vector<256x192xf32>
    %8 = arith.truncf %7 : vector<256x192xf32> to vector<256x192xbf16>
    %9 = vector.extract_strided_slice %8 {offsets = [0, 0], sizes = [256, 64], strides = [1, 1]} : vector<256x192xbf16> to vector<256x64xbf16>
    %10 = vector.shape_cast %9 : vector<256x64xbf16> to vector<2x128x64xbf16>
    %11 = vector.extract_strided_slice %8 {offsets = [0, 64], sizes = [256, 64], strides = [1, 1]} : vector<256x192xbf16> to vector<256x64xbf16>
    %12 = vector.shape_cast %11 : vector<256x64xbf16> to vector<2x128x64xbf16>
    %13 = vector.extract_strided_slice %8 {offsets = [0, 128], sizes = [256, 64], strides = [1, 1]} : vector<256x192xbf16> to vector<256x64xbf16>
    %14 = vector.shape_cast %13 : vector<256x64xbf16> to vector<2x128x64xbf16>
    %15 = vector.extract_strided_slice %10 {offsets = [0, 0, 0], sizes = [2, 64, 64], strides = [1, 1, 1]} : vector<2x128x64xbf16> to vector<2x64x64xbf16>
    %16 = vector.extract_strided_slice %12 {offsets = [0, 0, 0], sizes = [2, 64, 64], strides = [1, 1, 1]} : vector<2x128x64xbf16> to vector<2x64x64xbf16>
    %17 = vector.extract_strided_slice %14 {offsets = [0, 0, 0], sizes = [2, 64, 64], strides = [1, 1, 1]} : vector<2x128x64xbf16> to vector<2x64x64xbf16>
    "tpu.trace_start"() <{level = 10 : i32, message = "bqd,bkd->bqk"}> : () -> ()
    %cst_6 = arith.constant dense<0.000000e+00> : vector<2x64x64xf32>
    %18 = tpu.matmul %15, %16, %cst_6 {dimension_numbers = #tpu.dot_dimension_numbers<[2], [2], [1], [1], [0, 0, 0, 1, 1, 1], [0], [0]>} : vector<2x64x64xbf16>, vector<2x64x64xbf16>, vector<2x64x64xf32> -> vector<2x64x64xf32>
    "tpu.trace_stop"() : () -> ()
    %19 = tpu.iota {dimensions = array<i32: 0>} : vector<64x64xi32>
    %20 = tpu.iota {dimensions = array<i32: 1>} : vector<64x64xi32>
    %c0_i32 = arith.constant 0 : i32
    %21 = vector.broadcast %c0_i32 : i32 to vector<64x64xi32>
    %22 = arith.addi %19, %21 : vector<64x64xi32>
    %23 = arith.cmpi sle, %20, %22 : vector<64x64xi32>
    %24 = vector.shape_cast %23 : vector<64x64xi1> to vector<1x64x64xi1>
    %cst_7 = arith.constant 0xFF800000 : f32
    %25 = vector.shape_cast %24 : vector<1x64x64xi1> to vector<1x64x64xi1>
    %26 = vector.broadcast %25 : vector<1x64x64xi1> to vector<2x64x64xi1>
    %27 = vector.broadcast %cst_7 : f32 to vector<2x64x64xf32>
    %28 = arith.select %26, %18, %27 : vector<2x64x64xi1>, vector<2x64x64xf32>
    %cst_8 = arith.constant dense<0xFF800000> : vector<2x64xf32>
    %29 = vector.multi_reduction <maximumf>, %28, %cst_8 [2] : vector<2x64x64xf32> to vector<2x64xf32>
    %30 = vector.shape_cast %29 : vector<2x64xf32> to vector<2x64x1xf32>
    %31 = vector.broadcast %30 : vector<2x64x1xf32> to vector<2x64x64xf32>
    %32 = arith.subf %28, %31 : vector<2x64x64xf32>
    %33 = math.exp %32 : vector<2x64x64xf32>
    %cst_9 = arith.constant dense<0.000000e+00> : vector<2x64xf32>
    %34 = vector.multi_reduction <add>, %33, %cst_9 [2] : vector<2x64x64xf32> to vector<2x64xf32>
    %35 = vector.shape_cast %34 : vector<2x64xf32> to vector<2x64x1xf32>
    %36 = tpu.reciprocal %35 {approx = true} : vector<2x64x1xf32> -> vector<2x64x1xf32>
    %37 = vector.broadcast %36 : vector<2x64x1xf32> to vector<2x64x64xf32>
    %38 = arith.mulf %33, %37 : vector<2x64x64xf32>
    %39 = arith.truncf %38 : vector<2x64x64xf32> to vector<2x64x64xbf16>
    "tpu.trace_start"() <{level = 10 : i32, message = "bqk,bkd->bqd"}> : () -> ()
    %cst_10 = arith.constant dense<0.000000e+00> : vector<2x64x64xf32>
    %40 = tpu.matmul %39, %17, %cst_10 {dimension_numbers = #tpu.dot_dimension_numbers<[2], [1], [1], [2], [0, 0, 0, 1, 1, 2], [0], [0]>} : vector<2x64x64xbf16>, vector<2x64x64xbf16>, vector<2x64x64xf32> -> vector<2x64x64xf32>
    "tpu.trace_stop"() : () -> ()
    %c0_11 = arith.constant 0 : index
    %c0_12 = arith.constant 0 : index
    %c0_13 = arith.constant 0 : index
    %41 = vector.load %arg4[%c0_11, %c0_12, %c0_13] : memref<2x128x64xf32, #tpu.memory_space<vmem>>, vector<2x64x64xf32>
    tpu.vector_store %arg4[%c0_11, %c0_12, %c0_13], %40 {strides = array<i32>} : memref<2x128x64xf32, #tpu.memory_space<vmem>>, vector<2x64x64xf32>,
    %42 = vector.extract_strided_slice %10 {offsets = [0, 64, 0], sizes = [2, 64, 64], strides = [1, 1, 1]} : vector<2x128x64xbf16> to vector<2x64x64xbf16>
    "tpu.trace_start"() <{level = 10 : i32, message = "bqd,bkd->bqk"}> : () -> ()
    %cst_14 = arith.constant dense<0.000000e+00> : vector<2x64x128xf32>
    %43 = tpu.matmul %42, %12, %cst_14 {dimension_numbers = #tpu.dot_dimension_numbers<[2], [2], [1], [1], [0, 0, 0, 1, 1, 1], [0], [0]>} : vector<2x64x64xbf16>, vector<2x128x64xbf16>, vector<2x64x128xf32> -> vector<2x64x128xf32>
    "tpu.trace_stop"() : () -> ()
    %44 = tpu.iota {dimensions = array<i32: 0>} : vector<64x128xi32>
    %45 = tpu.iota {dimensions = array<i32: 1>} : vector<64x128xi32>
    %c64_i32 = arith.constant 64 : i32
    %46 = vector.broadcast %c64_i32 : i32 to vector<64x128xi32>
    %47 = arith.addi %44, %46 : vector<64x128xi32>
    %48 = arith.cmpi sle, %45, %47 : vector<64x128xi32>
    %49 = vector.shape_cast %48 : vector<64x128xi1> to vector<1x64x128xi1>
    %cst_15 = arith.constant 0xFF800000 : f32
    %50 = vector.shape_cast %49 : vector<1x64x128xi1> to vector<1x64x128xi1>
    %51 = vector.broadcast %50 : vector<1x64x128xi1> to vector<2x64x128xi1>
    %52 = vector.broadcast %cst_15 : f32 to vector<2x64x128xf32>
    %53 = arith.select %51, %43, %52 : vector<2x64x128xi1>, vector<2x64x128xf32>
    %cst_16 = arith.constant dense<0xFF800000> : vector<2x64xf32>
    %54 = vector.multi_reduction <maximumf>, %53, %cst_16 [2] : vector<2x64x128xf32> to vector<2x64xf32>
    %55 = vector.shape_cast %54 : vector<2x64xf32> to vector<2x64x1xf32>
    %56 = vector.broadcast %55 : vector<2x64x1xf32> to vector<2x64x128xf32>
    %57 = arith.subf %53, %56 : vector<2x64x128xf32>
    %58 = math.exp %57 : vector<2x64x128xf32>
    %cst_17 = arith.constant dense<0.000000e+00> : vector<2x64xf32>
    %59 = vector.multi_reduction <add>, %58, %cst_17 [2] : vector<2x64x128xf32> to vector<2x64xf32>
    %60 = vector.shape_cast %59 : vector<2x64xf32> to vector<2x64x1xf32>
    %61 = tpu.reciprocal %60 {approx = true} : vector<2x64x1xf32> -> vector<2x64x1xf32>
    %62 = vector.broadcast %61 : vector<2x64x1xf32> to vector<2x64x128xf32>
    %63 = arith.mulf %58, %62 : vector<2x64x128xf32>
    %64 = arith.truncf %63 : vector<2x64x128xf32> to vector<2x64x128xbf16>
    "tpu.trace_start"() <{level = 10 : i32, message = "bqk,bkd->bqd"}> : () -> ()
    %cst_18 = arith.constant dense<0.000000e+00> : vector<2x64x64xf32>
    %65 = tpu.matmul %64, %14, %cst_18 {dimension_numbers = #tpu.dot_dimension_numbers<[2], [1], [1], [2], [0, 0, 0, 1, 1, 2], [0], [0]>} : vector<2x64x128xbf16>, vector<2x128x64xbf16>, vector<2x64x64xf32> -> vector<2x64x64xf32>
    "tpu.trace_stop"() : () -> ()
    %c0_19 = arith.constant 0 : index
    %c64 = arith.constant 64 : index
    %c0_20 = arith.constant 0 : index
    %66 = vector.load %arg4[%c0_19, %c64, %c0_20] : memref<2x128x64xf32, #tpu.memory_space<vmem>>, vector<2x64x64xf32>
    tpu.vector_store %arg4[%c0_19, %c64, %c0_20], %65 {strides = array<i32>} : memref<2x128x64xf32, #tpu.memory_space<vmem>>, vector<2x64x64xf32>,
    return
  }
  func.func @transform_0(%arg0: i32) -> (i32, i32, i32) {
    %c0_i32 = arith.constant 0 : i32
    %c0_i32_0 = arith.constant 0 : i32
    %c0_i32_1 = arith.constant 0 : i32
    return %arg0, %c0_i32, %c0_i32_0 : i32, i32, i32
  }
  func.func @transform_1(%arg0: i32) -> (i32, i32) {
    %c0_i32 = arith.constant 0 : i32
    %c0_i32_0 = arith.constant 0 : i32
    %c0_i32_1 = arith.constant 0 : i32
    return %c0_i32, %c0_i32_0 : i32, i32
  }
  func.func @transform_2(%arg0: i32) -> (i32, i32) {
    %c0_i32 = arith.constant 0 : i32
    %c0_i32_0 = arith.constant 0 : i32
    %c0_i32_1 = arith.constant 0 : i32
    return %c0_i32, %c0_i32_0 : i32, i32
  }
  func.func @transform_3(%arg0: i32) -> (i32, i32, i32) {
    %c0_i32 = arith.constant 0 : i32
    %c0_i32_0 = arith.constant 0 : i32
    %c0_i32_1 = arith.constant 0 : i32
    return %arg0, %c0_i32, %c0_i32_0 : i32, i32, i32
  }
}

</mosaic_0001>

<llo_original>
// kernel: tpu_custom_call.1
$region0: #{tpu_custom_call.1}
  #allocation0 [shape = 'u32[]', space=smem, size = 0x4, offset = 0x4, fixed_abs, tag = 'smem constant byte address 0x4 - core index']
  #allocation1 [shape = 'u32[72,128]{1,0:T(1,128)}', space=vmem, size = 0x9000, scoped, tag = 'internal scratch']
  %s0 = inlined_call_operand.hbm [shape: f32[4,128,384], index: 0, kind: input, shape index: {}]
  %s1 = inlined_call_operand.vmem [shape: bf16[384,192], index: 1, kind: input, shape index: {}]
  %s2 = inlined_call_operand.vmem [shape: f32[1,192], index: 2, kind: input, shape index: {}]
  %s3 = inlined_call_operand.vmem [shape: f32[4,128,64], index: 3, kind: output, shape index: {}]
  %s4 = sld [smem:[#allocation0]]
  $region49: #{tpu_custom_call.1} parent=0
    _
  %s6 = ssub.s32 1, %s4
  %s7 = scalar_select 0, %s6, %s4
  $region1: #{tpu_custom_call.1} parent=0
    #allocation2 [shape = 'u8[786432]{0}', space=vmem, size = 0xc0000, scoped, tag = 'input window, operand 0']
    #allocation3 [shape = 's32[2]{0}', space=sflag, size = 0x8, scoped, tag = 'scoped memory for tpu_custom_call.1']
    %8 = vsyncpa [#allocation3], 0
    %s9 = scalar_lea.sflag [#allocation3], 1
    %10 = vsyncpa %s9, 0
    loop: start=0, step=1, limit=4
    $region2: #{tpu_custom_call.1} parent=1 // loop_pre_header
      _
    $region3: #{tpu_custom_call.1} parent=1 // loop_header
      %s12 = sphi 0, %s16
      %p13 = scmp.ge.s32.totalorder %s12, 4
      %s22 = sphi 0, %s24
      %s25 = sphi 0, %s22
      %s26 = sphi 0, %s25
      %s42 = sphi 0, %s26
      %s46 = sphi 0, %s46
      %s48 = sphi 0, %s46
      %s49 = sphi 0, %s48
      %s63 = sphi 0, %s49
      %s67 = sphi 0, %s67
      %s69 = sphi 0, %s67
      %s70 = sphi 0, %s69
      %s84 = sphi 0, %s70
      %s90 = sphi 0, %s92
      %s93 = sphi 0, %s90
      %s94 = sphi 0, %s93
      %s110 = sphi 0, %s94
    $region4: #{tpu_custom_call.1} parent=1 // loop_header_branch
      %15 = sbr.rel (%p13) target = $region8
    $region5: #{tpu_custom_call.1} parent=1 // loop_body
      %s17 = ssub.s32 %s12, 1
      %s18 = ssub.s32 %s12, 2
      %s19 = sadd.s32 %s12, 1
      %s20 = ssub.s32 %s12, %s19
      %p21 = scmp.eq.s32.totalorder %s20, 0
      %s23 = sadd.s32 %s22, 1
      %s24 = scalar_select %p21, %s22, %s23
      %p27 = pneg %p21
      %p28 = scmp.eq.s32.totalorder %s12, 1
      %p29 = por %p27, %p28
      %p30 = scmp.ne.s32.totalorder %s22, %s25
      %p31 = scmp.eq.s32.totalorder %s12, 0
      %p32 = por %p30, %p31
      %p33 = scmp.ne.s32.totalorder %s22, %s25
      %p34 = scmp.eq.s32.totalorder %s17, 1
      %p35 = por %p33, %p34
      %p36 = scmp.ne.s32.totalorder %s25, %s26
      %p37 = scmp.eq.s32.totalorder %s17, 0
      %p38 = por %p36, %p37
      %p39 = scmp.ne.s32.totalorder %s25, %s26
      %p40 = scmp.eq.s32.totalorder %s18, 1
      %p41 = por %p39, %p40
      %p43 = scmp.ne.s32.totalorder %s26, %s42
      %p44 = scmp.eq.s32.totalorder %s18, 0
      %p45 = por %p43, %p44
      %s47 = sadd.s32 %s46, 1
      %p50 = scmp.eq.s32.totalorder %s12, 1
      %p51 = scmp.ne.s32.totalorder %s46, %s48
      %p52 = scmp.eq.s32.totalorder %s12, 0
      %p53 = por %p51, %p52
      %p54 = scmp.ne.s32.totalorder %s46, %s48
      %p55 = scmp.eq.s32.totalorder %s17, 1
      %p56 = por %p54, %p55
      %p57 = scmp.ne.s32.totalorder %s48, %s49
      %p58 = scmp.eq.s32.totalorder %s17, 0
      %p59 = por %p57, %p58
      %p60 = scmp.ne.s32.totalorder %s48, %s49
      %p61 = scmp.eq.s32.totalorder %s18, 1
      %p62 = por %p60, %p61
      %p64 = scmp.ne.s32.totalorder %s49, %s63
      %p65 = scmp.eq.s32.totalorder %s18, 0
      %p66 = por %p64, %p65
      %s68 = sadd.s32 %s67, 1
      %p71 = scmp.eq.s32.totalorder %s12, 1
      %p72 = scmp.ne.s32.totalorder %s67, %s69
      %p73 = scmp.eq.s32.totalorder %s12, 0
      %p74 = por %p72, %p73
      %p75 = scmp.ne.s32.totalorder %s67, %s69
      %p76 = scmp.eq.s32.totalorder %s17, 1
      %p77 = por %p75, %p76
      %p78 = scmp.ne.s32.totalorder %s69, %s70
      %p79 = scmp.eq.s32.totalorder %s17, 0
      %p80 = por %p78, %p79
      %p81 = scmp.ne.s32.totalorder %s69, %s70
      %p82 = scmp.eq.s32.totalorder %s18, 1
      %p83 = por %p81, %p82
      %p85 = scmp.ne.s32.totalorder %s70, %s84
      %p86 = scmp.eq.s32.totalorder %s18, 0
      %p87 = por %p85, %p86
      %s88 = ssub.s32 %s12, %s19
      %p89 = scmp.eq.s32.totalorder %s88, 0
      %s91 = sadd.s32 %s90, 1
      %s92 = scalar_select %p89, %s90, %s91
      %p95 = pneg %p89
      %p96 = scmp.eq.s32.totalorder %s12, 1
      %p97 = por %p95, %p96
      %p98 = scmp.ne.s32.totalorder %s90, %s93
      %p99 = scmp.eq.s32.totalorder %s12, 0
      %p100 = por %p98, %p99
      %p101 = scmp.ne.s32.totalorder %s90, %s93
      %p102 = scmp.eq.s32.totalorder %s17, 1
      %p103 = por %p101, %p102
      %p104 = scmp.ne.s32.totalorder %s93, %s94
      %p105 = scmp.eq.s32.totalorder %s17, 0
      %p106 = por %p104, %p105
      %p107 = scmp.ne.s32.totalorder %s93, %s94
      %p108 = scmp.eq.s32.totalorder %s18, 1
      %p109 = por %p107, %p108
      %p111 = scmp.ne.s32.totalorder %s94, %s110
      %p112 = scmp.eq.s32.totalorder %s18, 0
      %p113 = por %p111, %p112
      %p114 = scmp.le.s32.totalorder 1, %s12
      %p115 = scmp.lt.s32.totalorder %s12, 3
      %p116 = pnand %p114, %p115
      %p117 = pneg %p116
      // Predicated region
      $region9: #{tpu_custom_call.1} parent=5 // pred_check
        _
      $region10: #{tpu_custom_call.1} parent=5 // pred_check_branch
        %119 = sbr.rel (%p116) target = $region12
      $region11: #{tpu_custom_call.1} parent=5 // pred_region
        %s120 = ssub.s32 %s12, 1
        // Predicated region
        $region13: #{tpu_custom_call.1} parent=11 // pred_check
          %p121 = pneg %p59
        $region14: #{tpu_custom_call.1} parent=11 // pred_check_branch
          %123 = sbr.rel (%p121) target = $region16
        $region15: #{tpu_custom_call.1} parent=11 // pred_region
          _
        $region16: #{tpu_custom_call.1} parent=11 // pred_fallthru
          _
        // Predicated region
        $region17: #{tpu_custom_call.1} parent=11 // pred_check
          %p124 = pneg %p80
        $region18: #{tpu_custom_call.1} parent=11 // pred_check_branch
          %126 = sbr.rel (%p124) target = $region20
        $region19: #{tpu_custom_call.1} parent=11 // pred_region
          _
        $region20: #{tpu_custom_call.1} parent=11 // pred_fallthru
          _
      $region12: #{tpu_custom_call.1} parent=5 // pred_fallthru
        _
      %p127 = scmp.lt.s32.totalorder %s12, 2
      // Predicated region
      $region21: #{tpu_custom_call.1} parent=5 // pred_check
        %p128 = pneg %p127
      $region22: #{tpu_custom_call.1} parent=5 // pred_check_branch
        %130 = sbr.rel (%p128) target = $region24
      $region23: #{tpu_custom_call.1} parent=5 // pred_region
        // Predicated region
        $region25: #{tpu_custom_call.1} parent=23 // pred_check
          %p131 = pneg %p32
        $region26: #{tpu_custom_call.1} parent=23 // pred_check_branch
          %133 = sbr.rel (%p131) target = $region28
        $region27: #{tpu_custom_call.1} parent=23 // pred_region
          %s134 = sand.u32 %s22, 1
          %s135 = scalar_lea.sflag [#allocation3], %s134
          %s136 = sand.u32 %s22, 1
          %s137 = smul.addr %s136, 768
          %s138 = scalar_lea.vmem [#allocation2], %s137
          %s139 = smul.u32 2, %s12
          %141 = vsyncadd %s135, 0
          %s142 = smul.addr %s139, 48
          %s143 = smul.addr %s142, 8
          %s144 = scalar_lea.hbm %s0, %s143
          %s145 = sshll.u32 %s144, 4
          %s146 = int_to_ptr.hbm [resolvable:$true] %s145
          %s147 = sshll.u32 %s138, 4
          %s148 = int_to_ptr.vmem [resolvable:$true] %s147
          %153 = dma.hbm_to_vmem [thread:$0]  %s146, 12288, %s148, %s135, 384, 384, 24
        $region28: #{tpu_custom_call.1} parent=23 // pred_fallthru
          _
      $region24: #{tpu_custom_call.1} parent=5 // pred_fallthru
        _
      %p154 = scmp.le.s32.totalorder 1, %s12
      %p155 = scmp.lt.s32.totalorder %s12, 3
      %p156 = pnand %p154, %p155
      %p157 = pneg %p156
      // Predicated region
      $region29: #{tpu_custom_call.1} parent=5 // pred_check
        _
      $region30: #{tpu_custom_call.1} parent=5 // pred_check_branch
        %159 = sbr.rel (%p156) target = $region32
      $region31: #{tpu_custom_call.1} parent=5 // pred_region
        %s160 = ssub.s32 %s12, 1
        %s161 = sand.u32 %s25, 1
        %s162 = scalar_lea.sflag [#allocation3], %s161
        %s163 = sand.u32 %s25, 1
        %s164 = smul.addr %s163, 768
        %s165 = scalar_lea.vmem [#allocation2], %s164
        // Predicated region
        $region33: #{tpu_custom_call.1} parent=31 // pred_check
          %p166 = pneg %p38
        $region34: #{tpu_custom_call.1} parent=31 // pred_check_branch
          %168 = sbr.rel (%p166) target = $region36
        $region35: #{tpu_custom_call.1} parent=31 // pred_region
          %170 = dma.done %s162, 12288
        $region36: #{tpu_custom_call.1} parent=31 // pred_fallthru
          _
        %s171 = sand.u32 %s25, 1
        %s172 = scalar_lea.sflag [#allocation3], %s171
        %s173 = sand.u32 %s25, 1
        %s174 = smul.addr %s173, 768
        %s175 = scalar_lea.vmem [#allocation2], %s174
        %p176 = pneg %p38
        %p177 = pneg %p35
        %p178 = pneg %p59
        %p179 = pneg %p56
        %p180 = pneg %p80
        %p181 = pneg %p77
        %p182 = pneg %p106
        %p183 = pneg %p103
        %s184 = smul.u32 2, %s17
        %p185 = scmp.lt.s32.totalorder %s184, 3
        %s186 = scalar_select %p185, %s184, 3
        %s187 = smul.addr %s186, 16
        %s188 = smul.addr %s187, 8
        %s189 = scalar_lea.vmem %s3, %s188
        %s190 = smul.u32 2, %s17
        %s191 = smul.u32 2, %s17
        %p192 = scmp.lt.s32.totalorder %s191, 3
        %s193 = scalar_select %p192, %s191, 3
        %s194 = smul.addr %s193, 16
        %s195 = smul.addr %s194, 8
        %s196 = scalar_lea.vmem %s3, %s195
        %s197 = smul.u32 2, %s17
        %v199 = vld [vmem:[%s165] sm:$0xff]
        %v200 = vld [vmem:[%s165 + $0x8] sm:$0xff]
        %v201 = vld [vmem:[%s165 + $0x10] sm:$0xff]
        %v202 = vld [vmem:[%s165 + $0x18] sm:$0xff]
        %v203 = vld [vmem:[%s165 + $0x20] sm:$0xff]
        %v204 = vld [vmem:[%s165 + $0x28] sm:$0xff]
        %v205 = vld [vmem:[%s165 + $0x30] sm:$0xff]
        %v206 = vld [vmem:[%s165 + $0x38] sm:$0xff]
        %v207 = vld [vmem:[%s165 + $0x40] sm:$0xff]
        %v208 = vld [vmem:[%s165 + $0x48] sm:$0xff]
        %v209 = vld [vmem:[%s165 + $0x50] sm:$0xff]
        %v210 = vld [vmem:[%s165 + $0x58] sm:$0xff]
        %v211 = vld [vmem:[%s165 + $0x60] sm:$0xff]
        %v212 = vld [vmem:[%s165 + $0x68] sm:$0xff]
        %v213 = vld [vmem:[%s165 + $0x70] sm:$0xff]
        %v214 = vld [vmem:[%s165 + $0x78] sm:$0xff]
        %v215 = vld [vmem:[%s165 + $0x80] sm:$0xff]
        %v216 = vld [vmem:[%s165 + $0x88] sm:$0xff]
        %v217 = vld [vmem:[%s165 + $0x90] sm:$0xff]
        %v218 = vld [vmem:[%s165 + $0x98] sm:$0xff]
        %v219 = vld [vmem:[%s165 + $0xa0] sm:$0xff]
        %v220 = vld [vmem:[%s165 + $0xa8] sm:$0xff]
        %v221 = vld [vmem:[%s165 + $0xb0] sm:$0xff]
        %v222 = vld [vmem:[%s165 + $0xb8] sm:$0xff]
        %v223 = vld [vmem:[%s165 + $0xc0] sm:$0xff]
        %v224 = vld [vmem:[%s165 + $0xc8] sm:$0xff]
        %v225 = vld [vmem:[%s165 + $0xd0] sm:$0xff]
        %v226 = vld [vmem:[%s165 + $0xd8] sm:$0xff]
        %v227 = vld [vmem:[%s165 + $0xe0] sm:$0xff]
        %v228 = vld [vmem:[%s165 + $0xe8] sm:$0xff]
        %v229 = vld [vmem:[%s165 + $0xf0] sm:$0xff]
        %v230 = vld [vmem:[%s165 + $0xf8] sm:$0xff]
        %v231 = vld [vmem:[%s165 + $0x100] sm:$0xff]
        %v232 = vld [vmem:[%s165 + $0x108] sm:$0xff]
        %v233 = vld [vmem:[%s165 + $0x110] sm:$0xff]
        %v234 = vld [vmem:[%s165 + $0x118] sm:$0xff]
        %v235 = vld [vmem:[%s165 + $0x120] sm:$0xff]
        %v236 = vld [vmem:[%s165 + $0x128] sm:$0xff]
        %v237 = vld [vmem:[%s165 + $0x130] sm:$0xff]
        %v238 = vld [vmem:[%s165 + $0x138] sm:$0xff]
        %v239 = vld [vmem:[%s165 + $0x140] sm:$0xff]
        %v240 = vld [vmem:[%s165 + $0x148] sm:$0xff]
        %v241 = vld [vmem:[%s165 + $0x150] sm:$0xff]
        %v242 = vld [vmem:[%s165 + $0x158] sm:$0xff]
        %v243 = vld [vmem:[%s165 + $0x160] sm:$0xff]
        %v244 = vld [vmem:[%s165 + $0x168] sm:$0xff]
        %v245 = vld [vmem:[%s165 + $0x170] sm:$0xff]
        %v246 = vld [vmem:[%s165 + $0x178] sm:$0xff]
        %v247 = vld [vmem:[%s165 + $0x180] sm:$0xff]
        %v248 = vld [vmem:[%s165 + $0x188] sm:$0xff]
        %v249 = vld [vmem:[%s165 + $0x190] sm:$0xff]
        %v250 = vld [vmem:[%s165 + $0x198] sm:$0xff]
        %v251 = vld [vmem:[%s165 + $0x1a0] sm:$0xff]
        %v252 = vld [vmem:[%s165 + $0x1a8] sm:$0xff]
        %v253 = vld [vmem:[%s165 + $0x1b0] sm:$0xff]
        %v254 = vld [vmem:[%s165 + $0x1b8] sm:$0xff]
        %v255 = vld [vmem:[%s165 + $0x1c0] sm:$0xff]
        %v256 = vld [vmem:[%s165 + $0x1c8] sm:$0xff]
        %v257 = vld [vmem:[%s165 + $0x1d0] sm:$0xff]
        %v258 = vld [vmem:[%s165 + $0x1d8] sm:$0xff]
        %v259 = vld [vmem:[%s165 + $0x1e0] sm:$0xff]
        %v260 = vld [vmem:[%s165 + $0x1e8] sm:$0xff]
        %v261 = vld [vmem:[%s165 + $0x1f0] sm:$0xff]
        %v262 = vld [vmem:[%s165 + $0x1f8] sm:$0xff]
        %v263 = vld [vmem:[%s165 + $0x200] sm:$0xff]
        %v264 = vld [vmem:[%s165 + $0x208] sm:$0xff]
        %v265 = vld [vmem:[%s165 + $0x210] sm:$0xff]
        %v266 = vld [vmem:[%s165 + $0x218] sm:$0xff]
        %v267 = vld [vmem:[%s165 + $0x220] sm:$0xff]
        %v268 = vld [vmem:[%s165 + $0x228] sm:$0xff]
        %v269 = vld [vmem:[%s165 + $0x230] sm:$0xff]
        %v270 = vld [vmem:[%s165 + $0x238] sm:$0xff]
        %v271 = vld [vmem:[%s165 + $0x240] sm:$0xff]
        %v272 = vld [vmem:[%s165 + $0x248] sm:$0xff]
        %v273 = vld [vmem:[%s165 + $0x250] sm:$0xff]
        %v274 = vld [vmem:[%s165 + $0x258] sm:$0xff]
        %v275 = vld [vmem:[%s165 + $0x260] sm:$0xff]
        %v276 = vld [vmem:[%s165 + $0x268] sm:$0xff]
        %v277 = vld [vmem:[%s165 + $0x270] sm:$0xff]
        %v278 = vld [vmem:[%s165 + $0x278] sm:$0xff]
        %v279 = vld [vmem:[%s165 + $0x280] sm:$0xff]
        %v280 = vld [vmem:[%s165 + $0x288] sm:$0xff]
        %v281 = vld [vmem:[%s165 + $0x290] sm:$0xff]
        %v282 = vld [vmem:[%s165 + $0x298] sm:$0xff]
        %v283 = vld [vmem:[%s165 + $0x2a0] sm:$0xff]
        %v284 = vld [vmem:[%s165 + $0x2a8] sm:$0xff]
        %v285 = vld [vmem:[%s165 + $0x2b0] sm:$0xff]
        %v286 = vld [vmem:[%s165 + $0x2b8] sm:$0xff]
        %v287 = vld [vmem:[%s165 + $0x2c0] sm:$0xff]
        %v288 = vld [vmem:[%s165 + $0x2c8] sm:$0xff]
        %v289 = vld [vmem:[%s165 + $0x2d0] sm:$0xff]
        %v290 = vld [vmem:[%s165 + $0x2d8] sm:$0xff]
        %v291 = vld [vmem:[%s165 + $0x2e0] sm:$0xff]
        %v292 = vld [vmem:[%s165 + $0x2e8] sm:$0xff]
        %v293 = vld [vmem:[%s165 + $0x2f0] sm:$0xff]
        %v294 = vld [vmem:[%s165 + $0x2f8] sm:$0xff]
        %v295 = vpack.c.bf16 %v200, %v199
        %v296 = vpack.c.bf16 %v201, %v201
        %v297 = vpack.c.bf16 %v203, %v202
        %v298 = vpack.c.bf16 %v204, %v204
        %v299 = vpack.c.bf16 %v206, %v205
        %v300 = vpack.c.bf16 %v207, %v207
        %v301 = vpack.c.bf16 %v209, %v208
        %v302 = vpack.c.bf16 %v210, %v210
        %v303 = vpack.c.bf16 %v212, %v211
        %v304 = vpack.c.bf16 %v213, %v213
        %v305 = vpack.c.bf16 %v215, %v214
        %v306 = vpack.c.bf16 %v216, %v216
        %v307 = vpack.c.bf16 %v218, %v217
        %v308 = vpack.c.bf16 %v219, %v219
        %v309 = vpack.c.bf16 %v221, %v220
        %v310 = vpack.c.bf16 %v222, %v222
        %v311 = vpack.c.bf16 %v224, %v223
        %v312 = vpack.c.bf16 %v225, %v225
        %v313 = vpack.c.bf16 %v227, %v226
        %v314 = vpack.c.bf16 %v228, %v228
        %v315 = vpack.c.bf16 %v230, %v229
        %v316 = vpack.c.bf16 %v231, %v231
        %v317 = vpack.c.bf16 %v233, %v232
        %v318 = vpack.c.bf16 %v234, %v234
        %v319 = vpack.c.bf16 %v236, %v235
        %v320 = vpack.c.bf16 %v237, %v237
        %v321 = vpack.c.bf16 %v239, %v238
        %v322 = vpack.c.bf16 %v240, %v240
        %v323 = vpack.c.bf16 %v242, %v241
        %v324 = vpack.c.bf16 %v243, %v243
        %v325 = vpack.c.bf16 %v245, %v244
        %v326 = vpack.c.bf16 %v246, %v246
        %v327 = vpack.c.bf16 %v248, %v247
        %v328 = vpack.c.bf16 %v249, %v249
        %v329 = vpack.c.bf16 %v251, %v250
        %v330 = vpack.c.bf16 %v252, %v252
        %v331 = vpack.c.bf16 %v254, %v253
        %v332 = vpack.c.bf16 %v255, %v255
        %v333 = vpack.c.bf16 %v257, %v256
        %v334 = vpack.c.bf16 %v258, %v258
        %v335 = vpack.c.bf16 %v260, %v259
        %v336 = vpack.c.bf16 %v261, %v261
        %v337 = vpack.c.bf16 %v263, %v262
        %v338 = vpack.c.bf16 %v264, %v264
        %v339 = vpack.c.bf16 %v266, %v265
        %v340 = vpack.c.bf16 %v267, %v267
        %v341 = vpack.c.bf16 %v269, %v268
        %v342 = vpack.c.bf16 %v270, %v270
        %v343 = vpack.c.bf16 %v272, %v271
        %v344 = vpack.c.bf16 %v273, %v273
        %v345 = vpack.c.bf16 %v275, %v274
        %v346 = vpack.c.bf16 %v276, %v276
        %v347 = vpack.c.bf16 %v278, %v277
        %v348 = vpack.c.bf16 %v279, %v279
        %v349 = vpack.c.bf16 %v281, %v280
        %v350 = vpack.c.bf16 %v282, %v282
        %v351 = vpack.c.bf16 %v284, %v283
        %v352 = vpack.c.bf16 %v285, %v285
        %v353 = vpack.c.bf16 %v287, %v286
        %v354 = vpack.c.bf16 %v288, %v288
        %v355 = vpack.c.bf16 %v290, %v289
        %v356 = vpack.c.bf16 %v291, %v291
        %v357 = vpack.c.bf16 %v293, %v292
        %v358 = vpack.c.bf16 %v294, %v294
        %v359 = vld [vmem:[%s1] sm:$0xff]
        %v360 = vld [vmem:[%s1 + $0x8] sm:$0xff]
        %v361 = vld [vmem:[%s1 + $0x10] sm:$0xff]
        %v362 = vld [vmem:[%s1 + $0x18] sm:$0xff]
        %v363 = vld [vmem:[%s1 + $0x20] sm:$0xff]
        %v364 = vld [vmem:[%s1 + $0x28] sm:$0xff]
        %v365 = vld [vmem:[%s1 + $0x30] sm:$0xff]
        %v366 = vld [vmem:[%s1 + $0x38] sm:$0xff]
        %v367 = vld [vmem:[%s1 + $0x40] sm:$0xff]
        %v368 = vld [vmem:[%s1 + $0x48] sm:$0xff]
        %v369 = vld [vmem:[%s1 + $0x50] sm:$0xff]
        %v370 = vld [vmem:[%s1 + $0x58] sm:$0xff]
        %v371 = vld [vmem:[%s1 + $0x60] sm:$0xff]
        %v372 = vld [vmem:[%s1 + $0x68] sm:$0xff]
        %v373 = vld [vmem:[%s1 + $0x70] sm:$0xff]
        %v374 = vld [vmem:[%s1 + $0x78] sm:$0xff]
        %v375 = vld [vmem:[%s1 + $0x80] sm:$0xff]
        %v376 = vld [vmem:[%s1 + $0x88] sm:$0xff]
        %v377 = vld [vmem:[%s1 + $0x90] sm:$0xff]
        %v378 = vld [vmem:[%s1 + $0x98] sm:$0xff]
        %v379 = vld [vmem:[%s1 + $0xa0] sm:$0xff]
        %v380 = vld [vmem:[%s1 + $0xa8] sm:$0xff]
        %v381 = vld [vmem:[%s1 + $0xb0] sm:$0xff]
        %v382 = vld [vmem:[%s1 + $0xb8] sm:$0xff]
        %v383 = vld [vmem:[%s1 + $0xc0] sm:$0xff]
        %v384 = vld [vmem:[%s1 + $0xc8] sm:$0xff]
        %v385 = vld [vmem:[%s1 + $0xd0] sm:$0xff]
        %v386 = vld [vmem:[%s1 + $0xd8] sm:$0xff]
        %v387 = vld [vmem:[%s1 + $0xe0] sm:$0xff]
        %v388 = vld [vmem:[%s1 + $0xe8] sm:$0xff]
        %v389 = vld [vmem:[%s1 + $0xf0] sm:$0xff]
        %v390 = vld [vmem:[%s1 + $0xf8] sm:$0xff]
        %v391 = vld [vmem:[%s1 + $0x100] sm:$0xff]
        %v392 = vld [vmem:[%s1 + $0x108] sm:$0xff]
        %v393 = vld [vmem:[%s1 + $0x110] sm:$0xff]
        %v394 = vld [vmem:[%s1 + $0x118] sm:$0xff]
        %v395 = vld [vmem:[%s1 + $0x120] sm:$0xff]
        %v396 = vld [vmem:[%s1 + $0x128] sm:$0xff]
        %v397 = vld [vmem:[%s1 + $0x130] sm:$0xff]
        %v398 = vld [vmem:[%s1 + $0x138] sm:$0xff]
        %v399 = vld [vmem:[%s1 + $0x140] sm:$0xff]
        %v400 = vld [vmem:[%s1 + $0x148] sm:$0xff]
        %v401 = vld [vmem:[%s1 + $0x150] sm:$0xff]
        %v402 = vld [vmem:[%s1 + $0x158] sm:$0xff]
        %v403 = vld [vmem:[%s1 + $0x160] sm:$0xff]
        %v404 = vld [vmem:[%s1 + $0x168] sm:$0xff]
        %v405 = vld [vmem:[%s1 + $0x170] sm:$0xff]
        %v406 = vld [vmem:[%s1 + $0x178] sm:$0xff]
        %v407 = vld [vmem:[%s2] sm:$0x3]
        %v409 = vperm.slane %v407, 0
        %v410 = vperm.slane %v407, 1
        %v477 = vunpack.c.l.b16 %v295
        %v478 = vunpack.c.h.b16 %v295
        %v479 = vunpack.c.l.b16 %v296
        %v480 = vunpack.c.l.b16 %v297
        %v481 = vunpack.c.h.b16 %v297
        %v482 = vunpack.c.l.b16 %v298
        %v483 = vunpack.c.l.b16 %v299
        %v484 = vunpack.c.h.b16 %v299
        %v485 = vunpack.c.l.b16 %v300
        %v486 = vunpack.c.l.b16 %v301
        %v487 = vunpack.c.h.b16 %v301
        %v488 = vunpack.c.l.b16 %v302
        %v489 = vunpack.c.l.b16 %v303
        %v490 = vunpack.c.h.b16 %v303
        %v491 = vunpack.c.l.b16 %v304
        %v492 = vunpack.c.l.b16 %v305
        %v493 = vunpack.c.h.b16 %v305
        %v494 = vunpack.c.l.b16 %v306
        %v495 = vunpack.c.l.b16 %v307
        %v496 = vunpack.c.h.b16 %v307
        %v497 = vunpack.c.l.b16 %v308
        %v498 = vunpack.c.l.b16 %v309
        %v499 = vunpack.c.h.b16 %v309
        %v500 = vunpack.c.l.b16 %v310
        %v501 = vunpack.c.l.b16 %v311
        %v502 = vunpack.c.h.b16 %v311
        %v503 = vunpack.c.l.b16 %v312
        %v504 = vunpack.c.l.b16 %v313
        %v505 = vunpack.c.h.b16 %v313
        %v506 = vunpack.c.l.b16 %v314
        %v507 = vunpack.c.l.b16 %v315
        %v508 = vunpack.c.h.b16 %v315
        %v509 = vunpack.c.l.b16 %v316
        %v510 = vunpack.c.l.b16 %v317
        %v511 = vunpack.c.h.b16 %v317
        %v512 = vunpack.c.l.b16 %v318
        %v513 = vunpack.c.l.b16 %v319
        %v514 = vunpack.c.h.b16 %v319
        %v515 = vunpack.c.l.b16 %v320
        %v516 = vunpack.c.l.b16 %v321
        %v517 = vunpack.c.h.b16 %v321
        %v518 = vunpack.c.l.b16 %v322
        %v519 = vunpack.c.l.b16 %v323
        %v520 = vunpack.c.h.b16 %v323
        %v521 = vunpack.c.l.b16 %v324
        %v522 = vunpack.c.l.b16 %v325
        %v523 = vunpack.c.h.b16 %v325
        %v524 = vunpack.c.l.b16 %v326
        %v525 = vunpack.c.l.b16 %v327
        %v526 = vunpack.c.h.b16 %v327
        %v527 = vunpack.c.l.b16 %v328
        %v528 = vunpack.c.l.b16 %v329
        %v529 = vunpack.c.h.b16 %v329
        %v530 = vunpack.c.l.b16 %v330
        %v531 = vunpack.c.l.b16 %v331
        %v532 = vunpack.c.h.b16 %v331
        %v533 = vunpack.c.l.b16 %v332
        %v534 = vunpack.c.l.b16 %v333
        %v535 = vunpack.c.h.b16 %v333
        %v536 = vunpack.c.l.b16 %v334
        %v537 = vunpack.c.l.b16 %v335
        %v538 = vunpack.c.h.b16 %v335
        %v539 = vunpack.c.l.b16 %v336
        %v540 = vunpack.c.l.b16 %v337
        %v541 = vunpack.c.h.b16 %v337
        %v542 = vunpack.c.l.b16 %v338
        %v543 = vunpack.c.l.b16 %v339
        %v544 = vunpack.c.h.b16 %v339
        %v545 = vunpack.c.l.b16 %v340
        %v546 = vunpack.c.l.b16 %v341
        %v547 = vunpack.c.h.b16 %v341
        %v548 = vunpack.c.l.b16 %v342
        %v549 = vunpack.c.l.b16 %v343
        %v550 = vunpack.c.h.b16 %v343
        %v551 = vunpack.c.l.b16 %v344
        %v552 = vunpack.c.l.b16 %v345
        %v553 = vunpack.c.h.b16 %v345
        %v554 = vunpack.c.l.b16 %v346
        %v555 = vunpack.c.l.b16 %v347
        %v556 = vunpack.c.h.b16 %v347
        %v557 = vunpack.c.l.b16 %v348
        %v558 = vunpack.c.l.b16 %v349
        %v559 = vunpack.c.h.b16 %v349
        %v560 = vunpack.c.l.b16 %v350
        %v561 = vunpack.c.l.b16 %v351
        %v562 = vunpack.c.h.b16 %v351
        %v563 = vunpack.c.l.b16 %v352
        %v564 = vunpack.c.l.b16 %v353
        %v565 = vunpack.c.h.b16 %v353
        %v566 = vunpack.c.l.b16 %v354
        %v567 = vunpack.c.l.b16 %v355
        %v568 = vunpack.c.h.b16 %v355
        %v569 = vunpack.c.l.b16 %v356
        %v570 = vunpack.c.l.b16 %v357
        %v571 = vunpack.c.h.b16 %v357
        %v572 = vunpack.c.l.b16 %v358
        %v573 = vpack.c.b16 %v480, %v477
        %v574 = vpack.c.b16 %v481, %v478
        %v575 = vpack.c.b16 %v482, %v479
        %v576 = vpack.c.b16 %v486, %v483
        %v577 = vpack.c.b16 %v487, %v484
        %v578 = vpack.c.b16 %v488, %v485
        %v579 = vpack.c.b16 %v492, %v489
        %v580 = vpack.c.b16 %v493, %v490
        %v581 = vpack.c.b16 %v494, %v491
        %v582 = vpack.c.b16 %v498, %v495
        %v583 = vpack.c.b16 %v499, %v496
        %v584 = vpack.c.b16 %v500, %v497
        %v585 = vpack.c.b16 %v504, %v501
        %v586 = vpack.c.b16 %v505, %v502
        %v587 = vpack.c.b16 %v506, %v503
        %v588 = vpack.c.b16 %v510, %v507
        %v589 = vpack.c.b16 %v511, %v508
        %v590 = vpack.c.b16 %v512, %v509
        %v591 = vpack.c.b16 %v516, %v513
        %v592 = vpack.c.b16 %v517, %v514
        %v593 = vpack.c.b16 %v518, %v515
        %v594 = vpack.c.b16 %v522, %v519
        %v595 = vpack.c.b16 %v523, %v520
        %v596 = vpack.c.b16 %v524, %v521
        %v597 = vpack.c.b16 %v528, %v525
        %v598 = vpack.c.b16 %v529, %v526
        %v599 = vpack.c.b16 %v530, %v527
        %v600 = vpack.c.b16 %v534, %v531
        %v601 = vpack.c.b16 %v535, %v532
        %v602 = vpack.c.b16 %v536, %v533
        %v603 = vpack.c.b16 %v540, %v537
        %v604 = vpack.c.b16 %v541, %v538
        %v605 = vpack.c.b16 %v542, %v539
        %v606 = vpack.c.b16 %v546, %v543
        %v607 = vpack.c.b16 %v547, %v544
        %v608 = vpack.c.b16 %v548, %v545
        %v609 = vpack.c.b16 %v552, %v549
        %v610 = vpack.c.b16 %v553, %v550
        %v611 = vpack.c.b16 %v554, %v551
        %v612 = vpack.c.b16 %v558, %v555
        %v613 = vpack.c.b16 %v559, %v556
        %v614 = vpack.c.b16 %v560, %v557
        %v615 = vpack.c.b16 %v564, %v561
        %v616 = vpack.c.b16 %v565, %v562
        %v617 = vpack.c.b16 %v566, %v563
        %v618 = vpack.c.b16 %v570, %v567
        %v619 = vpack.c.b16 %v571, %v568
        %v620 = vpack.c.b16 %v572, %v569
        %v717 = vunpack.c.l.b16 %v359
        %v718 = vunpack.c.h.b16 %v359
        %v719 = vunpack.c.l.b16 %v360
        %v720 = vunpack.c.h.b16 %v360
        %v721 = vunpack.c.l.b16 %v361
        %v722 = vunpack.c.h.b16 %v361
        %v723 = vunpack.c.l.b16 %v362
        %v724 = vunpack.c.h.b16 %v362
        %v725 = vunpack.c.l.b16 %v363
        %v726 = vunpack.c.h.b16 %v363
        %v727 = vunpack.c.l.b16 %v364
        %v728 = vunpack.c.h.b16 %v364
        %v729 = vunpack.c.l.b16 %v365
        %v730 = vunpack.c.h.b16 %v365
        %v731 = vunpack.c.l.b16 %v366
        %v732 = vunpack.c.h.b16 %v366
        %v733 = vunpack.c.l.b16 %v367
        %v734 = vunpack.c.h.b16 %v367
        %v735 = vunpack.c.l.b16 %v368
        %v736 = vunpack.c.h.b16 %v368
        %v737 = vunpack.c.l.b16 %v369
        %v738 = vunpack.c.h.b16 %v369
        %v739 = vunpack.c.l.b16 %v370
        %v740 = vunpack.c.h.b16 %v370
        %v741 = vunpack.c.l.b16 %v371
        %v742 = vunpack.c.h.b16 %v371
        %v743 = vunpack.c.l.b16 %v372
        %v744 = vunpack.c.h.b16 %v372
        %v745 = vunpack.c.l.b16 %v373
        %v746 = vunpack.c.h.b16 %v373
        %v747 = vunpack.c.l.b16 %v374
        %v748 = vunpack.c.h.b16 %v374
        %v749 = vunpack.c.l.b16 %v375
        %v750 = vunpack.c.h.b16 %v375
        %v751 = vunpack.c.l.b16 %v376
        %v752 = vunpack.c.h.b16 %v376
        %v753 = vunpack.c.l.b16 %v377
        %v754 = vunpack.c.h.b16 %v377
        %v755 = vunpack.c.l.b16 %v378
        %v756 = vunpack.c.h.b16 %v378
        %v757 = vunpack.c.l.b16 %v379
        %v758 = vunpack.c.h.b16 %v379
        %v759 = vunpack.c.l.b16 %v380
        %v760 = vunpack.c.h.b16 %v380
        %v761 = vunpack.c.l.b16 %v381
        %v762 = vunpack.c.h.b16 %v381
        %v763 = vunpack.c.l.b16 %v382
        %v764 = vunpack.c.h.b16 %v382
        %v765 = vunpack.c.l.b16 %v383
        %v766 = vunpack.c.h.b16 %v383
        %v767 = vunpack.c.l.b16 %v384
        %v768 = vunpack.c.h.b16 %v384
        %v769 = vunpack.c.l.b16 %v385
        %v770 = vunpack.c.h.b16 %v385
        %v771 = vunpack.c.l.b16 %v386
        %v772 = vunpack.c.h.b16 %v386
        %v773 = vunpack.c.l.b16 %v387
        %v774 = vunpack.c.h.b16 %v387
        %v775 = vunpack.c.l.b16 %v388
        %v776 = vunpack.c.h.b16 %v388
        %v777 = vunpack.c.l.b16 %v389
        %v778 = vunpack.c.h.b16 %v389
        %v779 = vunpack.c.l.b16 %v390
        %v780 = vunpack.c.h.b16 %v390
        %v781 = vunpack.c.l.b16 %v391
        %v782 = vunpack.c.h.b16 %v391
        %v783 = vunpack.c.l.b16 %v392
        %v784 = vunpack.c.h.b16 %v392
        %v785 = vunpack.c.l.b16 %v393
        %v786 = vunpack.c.h.b16 %v393
        %v787 = vunpack.c.l.b16 %v394
        %v788 = vunpack.c.h.b16 %v394
        %v789 = vunpack.c.l.b16 %v395
        %v790 = vunpack.c.h.b16 %v395
        %v791 = vunpack.c.l.b16 %v396
        %v792 = vunpack.c.h.b16 %v396
        %v793 = vunpack.c.l.b16 %v397
        %v794 = vunpack.c.h.b16 %v397
        %v795 = vunpack.c.l.b16 %v398
        %v796 = vunpack.c.h.b16 %v398
        %v797 = vunpack.c.l.b16 %v399
        %v798 = vunpack.c.h.b16 %v399
        %v799 = vunpack.c.l.b16 %v400
        %v800 = vunpack.c.h.b16 %v400
        %v801 = vunpack.c.l.b16 %v401
        %v802 = vunpack.c.h.b16 %v401
        %v803 = vunpack.c.l.b16 %v402
        %v804 = vunpack.c.h.b16 %v402
        %v805 = vunpack.c.l.b16 %v403
        %v806 = vunpack.c.h.b16 %v403
        %v807 = vunpack.c.l.b16 %v404
        %v808 = vunpack.c.h.b16 %v404
        %v809 = vunpack.c.l.b16 %v405
        %v810 = vunpack.c.h.b16 %v405
        %v811 = vunpack.c.l.b16 %v406
        %v812 = vunpack.c.h.b16 %v406
        %v813 = vpack.c.b16 %v719, %v717
        %v814 = vpack.c.b16 %v720, %v718
        %v815 = vpack.c.b16 %v723, %v721
        %v816 = vpack.c.b16 %v724, %v722
        %v817 = vpack.c.b16 %v727, %v725
        %v818 = vpack.c.b16 %v728, %v726
        %v819 = vpack.c.b16 %v731, %v729
        %v820 = vpack.c.b16 %v732, %v730
        %v821 = vpack.c.b16 %v735, %v733
        %v822 = vpack.c.b16 %v736, %v734
        %v823 = vpack.c.b16 %v739, %v737
        %v824 = vpack.c.b16 %v740, %v738
        %v825 = vpack.c.b16 %v743, %v741
        %v826 = vpack.c.b16 %v744, %v742
        %v827 = vpack.c.b16 %v747, %v745
        %v828 = vpack.c.b16 %v748, %v746
        %v829 = vpack.c.b16 %v751, %v749
        %v830 = vpack.c.b16 %v752, %v750
        %v831 = vpack.c.b16 %v755, %v753
        %v832 = vpack.c.b16 %v756, %v754
        %v833 = vpack.c.b16 %v759, %v757
        %v834 = vpack.c.b16 %v760, %v758
        %v835 = vpack.c.b16 %v763, %v761
        %v836 = vpack.c.b16 %v764, %v762
        %v837 = vpack.c.b16 %v767, %v765
        %v838 = vpack.c.b16 %v768, %v766
        %v839 = vpack.c.b16 %v771, %v769
        %v840 = vpack.c.b16 %v772, %v770
        %v841 = vpack.c.b16 %v775, %v773
        %v842 = vpack.c.b16 %v776, %v774
        %v843 = vpack.c.b16 %v779, %v777
        %v844 = vpack.c.b16 %v780, %v778
        %v845 = vpack.c.b16 %v783, %v781
        %v846 = vpack.c.b16 %v784, %v782
        %v847 = vpack.c.b16 %v787, %v785
        %v848 = vpack.c.b16 %v788, %v786
        %v849 = vpack.c.b16 %v791, %v789
        %v850 = vpack.c.b16 %v792, %v790
        %v851 = vpack.c.b16 %v795, %v793
        %v852 = vpack.c.b16 %v796, %v794
        %v853 = vpack.c.b16 %v799, %v797
        %v854 = vpack.c.b16 %v800, %v798
        %v855 = vpack.c.b16 %v803, %v801
        %v856 = vpack.c.b16 %v804, %v802
        %v857 = vpack.c.b16 %v807, %v805
        %v858 = vpack.c.b16 %v808, %v806
        %v859 = vpack.c.b16 %v811, %v809
        %v860 = vpack.c.b16 %v812, %v810
        %909 = vmatpush.bf16.msra.mxu0 %v827
        %910 = vmatpush.bf16.msra.mxu0 %v825
        %911 = vmatpush.bf16.msra.mxu0 %v823
        %912 = vmatpush.bf16.msra.mxu0 %v821
        %913 = vmatpush.bf16.msra.mxu0 %v819
        %914 = vmatpush.bf16.msra.mxu0 %v817
        %915 = vmatpush.bf16.msra.mxu0 %v815
        %916 = vmatpush.bf16.msra.mxu0 %v813
        %917 = vmatmul.bf16.gmra.mxu0 %v573
        %v918 = vpop.f32.mrf.mxu0
        %v919 = vadd.f32 %v409, %v918
        %v920 = vpop.f32.mrf.mxu0
        %v921 = vadd.f32 %v409, %v920
        %922 = vmatmul.bf16.gmra.mxu0 %v576
        %v923 = vpop.f32.mrf.mxu0
        %v924 = vadd.f32 %v409, %v923
        %v925 = vpop.f32.mrf.mxu0
        %v926 = vadd.f32 %v409, %v925
        %927 = vmatmul.bf16.gmra.mxu0 %v579
        %v928 = vpop.f32.mrf.mxu0
        %v929 = vadd.f32 %v409, %v928
        %v930 = vpop.f32.mrf.mxu0
        %v931 = vadd.f32 %v409, %v930
        %932 = vmatmul.bf16.gmra.mxu0 %v582
        %v933 = vpop.f32.mrf.mxu0
        %v934 = vadd.f32 %v409, %v933
        %v935 = vpop.f32.mrf.mxu0
        %v936 = vadd.f32 %v409, %v935
        %937 = vmatmul.bf16.gmra.mxu0 %v585
        %v938 = vpop.f32.mrf.mxu0
        %v939 = vadd.f32 %v409, %v938
        %v940 = vpop.f32.mrf.mxu0
        %v941 = vadd.f32 %v409, %v940
        %942 = vmatmul.bf16.gmra.mxu0 %v588
        %v943 = vpop.f32.mrf.mxu0
        %v944 = vadd.f32 %v409, %v943
        %v945 = vpop.f32.mrf.mxu0
        %v946 = vadd.f32 %v409, %v945
        %947 = vmatmul.bf16.gmra.mxu0 %v591
        %v948 = vpop.f32.mrf.mxu0
        %v949 = vadd.f32 %v409, %v948
        %v950 = vpop.f32.mrf.mxu0
        %v951 = vadd.f32 %v409, %v950
        %952 = vmatmul.bf16.gmra.mxu0 %v594
        %v953 = vpop.f32.mrf.mxu0
        %v954 = vadd.f32 %v409, %v953
        %v955 = vpop.f32.mrf.mxu0
        %v956 = vadd.f32 %v409, %v955
        %957 = vmatmul.bf16.gmra.mxu0 %v597
        %v958 = vpop.f32.mrf.mxu0
        %v959 = vadd.f32 %v409, %v958
        %v960 = vpop.f32.mrf.mxu0
        %v961 = vadd.f32 %v409, %v960
        %962 = vmatmul.bf16.gmra.mxu0 %v600
        %v963 = vpop.f32.mrf.mxu0
        %v964 = vadd.f32 %v409, %v963
        %v965 = vpop.f32.mrf.mxu0
        %v966 = vadd.f32 %v409, %v965
        %967 = vmatmul.bf16.gmra.mxu0 %v603
        %v968 = vpop.f32.mrf.mxu0
        %v969 = vadd.f32 %v409, %v968
        %v970 = vpop.f32.mrf.mxu0
        %v971 = vadd.f32 %v409, %v970
        %972 = vmatmul.bf16.gmra.mxu0 %v606
        %v973 = vpop.f32.mrf.mxu0
        %v974 = vadd.f32 %v409, %v973
        %v975 = vpop.f32.mrf.mxu0
        %v976 = vadd.f32 %v409, %v975
        %977 = vmatmul.bf16.gmra.mxu0 %v609
        %v978 = vpop.f32.mrf.mxu0
        %v979 = vadd.f32 %v409, %v978
        %v980 = vpop.f32.mrf.mxu0
        %v981 = vadd.f32 %v409, %v980
        %982 = vmatmul.bf16.gmra.mxu0 %v612
        %v983 = vpop.f32.mrf.mxu0
        %v984 = vadd.f32 %v409, %v983
        %v985 = vpop.f32.mrf.mxu0
        %v986 = vadd.f32 %v409, %v985
        %987 = vmatmul.bf16.gmra.mxu0 %v615
        %v988 = vpop.f32.mrf.mxu0
        %v989 = vadd.f32 %v409, %v988
        %v990 = vpop.f32.mrf.mxu0
        %v991 = vadd.f32 %v409, %v990
        %992 = vmatmul.bf16.gmra.mxu0 %v618
        %v993 = vpop.f32.mrf.mxu0
        %v994 = vadd.f32 %v409, %v993
        %v995 = vpop.f32.mrf.mxu0
        %v996 = vadd.f32 %v409, %v995
        %997 = vdwg.mxu0
        %998 = vmatpush.bf16.msra.mxu0 %v843
        %999 = vmatpush.bf16.msra.mxu0 %v841
        %1000 = vmatpush.bf16.msra.mxu0 %v839
        %1001 = vmatpush.bf16.msra.mxu0 %v837
        %1002 = vmatpush.bf16.msra.mxu0 %v835
        %1003 = vmatpush.bf16.msra.mxu0 %v833
        %1004 = vmatpush.bf16.msra.mxu0 %v831
        %1005 = vmatpush.bf16.msra.mxu0 %v829
        %1006 = vmatmul.bf16.gmra.mxu0 %v574
        %v1007 = vpop.f32.mrf.mxu0
        %v1008 = vadd.f32 %v919, %v1007
        %v1009 = vpop.f32.mrf.mxu0
        %v1010 = vadd.f32 %v921, %v1009
        %1011 = vmatmul.bf16.gmra.mxu0 %v577
        %v1012 = vpop.f32.mrf.mxu0
        %v1013 = vadd.f32 %v924, %v1012
        %v1014 = vpop.f32.mrf.mxu0
        %v1015 = vadd.f32 %v926, %v1014
        %1016 = vmatmul.bf16.gmra.mxu0 %v580
        %v1017 = vpop.f32.mrf.mxu0
        %v1018 = vadd.f32 %v929, %v1017
        %v1019 = vpop.f32.mrf.mxu0
        %v1020 = vadd.f32 %v931, %v1019
        %1021 = vmatmul.bf16.gmra.mxu0 %v583
        %v1022 = vpop.f32.mrf.mxu0
        %v1023 = vadd.f32 %v934, %v1022
        %v1024 = vpop.f32.mrf.mxu0
        %v1025 = vadd.f32 %v936, %v1024
        %1026 = vmatmul.bf16.gmra.mxu0 %v586
        %v1027 = vpop.f32.mrf.mxu0
        %v1028 = vadd.f32 %v939, %v1027
        %v1029 = vpop.f32.mrf.mxu0
        %v1030 = vadd.f32 %v941, %v1029
        %1031 = vmatmul.bf16.gmra.mxu0 %v589
        %v1032 = vpop.f32.mrf.mxu0
        %v1033 = vadd.f32 %v944, %v1032
        %v1034 = vpop.f32.mrf.mxu0
        %v1035 = vadd.f32 %v946, %v1034
        %1036 = vmatmul.bf16.gmra.mxu0 %v592
        %v1037 = vpop.f32.mrf.mxu0
        %v1038 = vadd.f32 %v949, %v1037
        %v1039 = vpop.f32.mrf.mxu0
        %v1040 = vadd.f32 %v951, %v1039
        %1041 = vmatmul.bf16.gmra.mxu0 %v595
        %v1042 = vpop.f32.mrf.mxu0
        %v1043 = vadd.f32 %v954, %v1042
        %v1044 = vpop.f32.mrf.mxu0
        %v1045 = vadd.f32 %v956, %v1044
        %1046 = vmatmul.bf16.gmra.mxu0 %v598
        %v1047 = vpop.f32.mrf.mxu0
        %v1048 = vadd.f32 %v959, %v1047
        %v1049 = vpop.f32.mrf.mxu0
        %v1050 = vadd.f32 %v961, %v1049
        %1051 = vmatmul.bf16.gmra.mxu0 %v601
        %v1052 = vpop.f32.mrf.mxu0
        %v1053 = vadd.f32 %v964, %v1052
        %v1054 = vpop.f32.mrf.mxu0
        %v1055 = vadd.f32 %v966, %v1054
        %1056 = vmatmul.bf16.gmra.mxu0 %v604
        %v1057 = vpop.f32.mrf.mxu0
        %v1058 = vadd.f32 %v969, %v1057
        %v1059 = vpop.f32.mrf.mxu0
        %v1060 = vadd.f32 %v971, %v1059
        %1061 = vmatmul.bf16.gmra.mxu0 %v607
        %v1062 = vpop.f32.mrf.mxu0
        %v1063 = vadd.f32 %v974, %v1062
        %v1064 = vpop.f32.mrf.mxu0
        %v1065 = vadd.f32 %v976, %v1064
        %1066 = vmatmul.bf16.gmra.mxu0 %v610
        %v1067 = vpop.f32.mrf.mxu0
        %v1068 = vadd.f32 %v979, %v1067
        %v1069 = vpop.f32.mrf.mxu0
        %v1070 = vadd.f32 %v981, %v1069
        %1071 = vmatmul.bf16.gmra.mxu0 %v613
        %v1072 = vpop.f32.mrf.mxu0
        %v1073 = vadd.f32 %v984, %v1072
        %v1074 = vpop.f32.mrf.mxu0
        %v1075 = vadd.f32 %v986, %v1074
        %1076 = vmatmul.bf16.gmra.mxu0 %v616
        %v1077 = vpop.f32.mrf.mxu0
        %v1078 = vadd.f32 %v989, %v1077
        %v1079 = vpop.f32.mrf.mxu0
        %v1080 = vadd.f32 %v991, %v1079
        %1081 = vmatmul.bf16.gmra.mxu0 %v619
        %v1082 = vpop.f32.mrf.mxu0
        %v1083 = vadd.f32 %v994, %v1082
        %v1084 = vpop.f32.mrf.mxu0
        %v1085 = vadd.f32 %v996, %v1084
        %1086 = vdwg.mxu0
        %1087 = vmatpush.bf16.msra.mxu0 %v859
        %1088 = vmatpush.bf16.msra.mxu0 %v857
        %1089 = vmatpush.bf16.msra.mxu0 %v855
        %1090 = vmatpush.bf16.msra.mxu0 %v853
        %1091 = vmatpush.bf16.msra.mxu0 %v851
        %1092 = vmatpush.bf16.msra.mxu0 %v849
        %1093 = vmatpush.bf16.msra.mxu0 %v847
        %1094 = vmatpush.bf16.msra.mxu0 %v845
        %1095 = vmatmul.bf16.gmra.mxu0 %v575
        %v1096 = vpop.f32.mrf.mxu0
        %v1097 = vadd.f32 %v1008, %v1096
        %v1098 = vpop.f32.mrf.mxu0
        %v1099 = vadd.f32 %v1010, %v1098
        %1100 = vmatmul.bf16.gmra.mxu0 %v578
        %v1101 = vpop.f32.mrf.mxu0
        %v1102 = vadd.f32 %v1013, %v1101
        %v1103 = vpop.f32.mrf.mxu0
        %v1104 = vadd.f32 %v1015, %v1103
        %1105 = vmatmul.bf16.gmra.mxu0 %v581
        %v1106 = vpop.f32.mrf.mxu0
        %v1107 = vadd.f32 %v1018, %v1106
        %v1108 = vpop.f32.mrf.mxu0
        %v1109 = vadd.f32 %v1020, %v1108
        %1110 = vmatmul.bf16.gmra.mxu0 %v584
        %v1111 = vpop.f32.mrf.mxu0
        %v1112 = vadd.f32 %v1023, %v1111
        %v1113 = vpop.f32.mrf.mxu0
        %v1114 = vadd.f32 %v1025, %v1113
        %1115 = vmatmul.bf16.gmra.mxu0 %v587
        %v1116 = vpop.f32.mrf.mxu0
        %v1117 = vadd.f32 %v1028, %v1116
        %v1118 = vpop.f32.mrf.mxu0
        %v1119 = vadd.f32 %v1030, %v1118
        %1120 = vmatmul.bf16.gmra.mxu0 %v590
        %v1121 = vpop.f32.mrf.mxu0
        %v1122 = vadd.f32 %v1033, %v1121
        %v1123 = vpop.f32.mrf.mxu0
        %v1124 = vadd.f32 %v1035, %v1123
        %1125 = vmatmul.bf16.gmra.mxu0 %v593
        %v1126 = vpop.f32.mrf.mxu0
        %v1127 = vadd.f32 %v1038, %v1126
        %v1128 = vpop.f32.mrf.mxu0
        %v1129 = vadd.f32 %v1040, %v1128
        %1130 = vmatmul.bf16.gmra.mxu0 %v596
        %v1131 = vpop.f32.mrf.mxu0
        %v1132 = vadd.f32 %v1043, %v1131
        %v1133 = vpop.f32.mrf.mxu0
        %v1134 = vadd.f32 %v1045, %v1133
        %1135 = vmatmul.bf16.gmra.mxu0 %v599
        %v1136 = vpop.f32.mrf.mxu0
        %v1137 = vadd.f32 %v1048, %v1136
        %v1138 = vpop.f32.mrf.mxu0
        %v1139 = vadd.f32 %v1050, %v1138
        %1140 = vmatmul.bf16.gmra.mxu0 %v602
        %v1141 = vpop.f32.mrf.mxu0
        %v1142 = vadd.f32 %v1053, %v1141
        %v1143 = vpop.f32.mrf.mxu0
        %v1144 = vadd.f32 %v1055, %v1143
        %1145 = vmatmul.bf16.gmra.mxu0 %v605
        %v1146 = vpop.f32.mrf.mxu0
        %v1147 = vadd.f32 %v1058, %v1146
        %v1148 = vpop.f32.mrf.mxu0
        %v1149 = vadd.f32 %v1060, %v1148
        %1150 = vmatmul.bf16.gmra.mxu0 %v608
        %v1151 = vpop.f32.mrf.mxu0
        %v1152 = vadd.f32 %v1063, %v1151
        %v1153 = vpop.f32.mrf.mxu0
        %v1154 = vadd.f32 %v1065, %v1153
        %1155 = vmatmul.bf16.gmra.mxu0 %v611
        %v1156 = vpop.f32.mrf.mxu0
        %v1157 = vadd.f32 %v1068, %v1156
        %v1158 = vpop.f32.mrf.mxu0
        %v1159 = vadd.f32 %v1070, %v1158
        %1160 = vmatmul.bf16.gmra.mxu0 %v614
        %v1161 = vpop.f32.mrf.mxu0
        %v1162 = vadd.f32 %v1073, %v1161
        %v1163 = vpop.f32.mrf.mxu0
        %v1164 = vadd.f32 %v1075, %v1163
        %1165 = vmatmul.bf16.gmra.mxu0 %v617
        %v1166 = vpop.f32.mrf.mxu0
        %v1167 = vadd.f32 %v1078, %v1166
        %v1168 = vpop.f32.mrf.mxu0
        %v1169 = vadd.f32 %v1080, %v1168
        %1170 = vmatmul.bf16.gmra.mxu0 %v620
        %v1171 = vpop.f32.mrf.mxu0
        %v1172 = vadd.f32 %v1083, %v1171
        %v1173 = vpop.f32.mrf.mxu0
        %v1174 = vadd.f32 %v1085, %v1173
        %1175 = vdwg.mxu0
        %1176 = vmatpush.bf16.msra.mxu0 %v828
        %1177 = vmatpush.bf16.msra.mxu0 %v826
        %1178 = vmatpush.bf16.msra.mxu0 %v824
        %1179 = vmatpush.bf16.msra.mxu0 %v822
        %1180 = vmatpush.bf16.msra.mxu0 %v820
        %1181 = vmatpush.bf16.msra.mxu0 %v818
        %1182 = vmatpush.bf16.msra.mxu0 %v816
        %1183 = vmatpush.bf16.msra.mxu0 %v814
        %1184 = vmatmul.bf16.gmra.mxu0 %v573
        %v1185 = vpop.f32.mrf.mxu0
        %v1186 = vadd.f32 %v410, %v1185
        %v1187 = vpop.f32.mrf.mxu0
        %v1188 = vadd.f32 %v410, %v1187
        %1189 = vmatmul.bf16.gmra.mxu0 %v576
        %v1190 = vpop.f32.mrf.mxu0
        %v1191 = vadd.f32 %v410, %v1190
        %v1192 = vpop.f32.mrf.mxu0
        %v1193 = vadd.f32 %v410, %v1192
        %1194 = vmatmul.bf16.gmra.mxu0 %v579
        %v1195 = vpop.f32.mrf.mxu0
        %v1196 = vadd.f32 %v410, %v1195
        %v1197 = vpop.f32.mrf.mxu0
        %v1198 = vadd.f32 %v410, %v1197
        %1199 = vmatmul.bf16.gmra.mxu0 %v582
        %v1200 = vpop.f32.mrf.mxu0
        %v1201 = vadd.f32 %v410, %v1200
        %v1202 = vpop.f32.mrf.mxu0
        %v1203 = vadd.f32 %v410, %v1202
        %1204 = vmatmul.bf16.gmra.mxu0 %v585
        %v1205 = vpop.f32.mrf.mxu0
        %v1206 = vadd.f32 %v410, %v1205
        %v1207 = vpop.f32.mrf.mxu0
        %v1208 = vadd.f32 %v410, %v1207
        %1209 = vmatmul.bf16.gmra.mxu0 %v588
        %v1210 = vpop.f32.mrf.mxu0
        %v1211 = vadd.f32 %v410, %v1210
        %v1212 = vpop.f32.mrf.mxu0
        %v1213 = vadd.f32 %v410, %v1212
        %1214 = vmatmul.bf16.gmra.mxu0 %v591
        %v1215 = vpop.f32.mrf.mxu0
        %v1216 = vadd.f32 %v410, %v1215
        %v1217 = vpop.f32.mrf.mxu0
        %v1218 = vadd.f32 %v410, %v1217
        %1219 = vmatmul.bf16.gmra.mxu0 %v594
        %v1220 = vpop.f32.mrf.mxu0
        %v1221 = vadd.f32 %v410, %v1220
        %v1222 = vpop.f32.mrf.mxu0
        %v1223 = vadd.f32 %v410, %v1222
        %1224 = vmatmul.bf16.gmra.mxu0 %v597
        %v1225 = vpop.f32.mrf.mxu0
        %v1226 = vadd.f32 %v410, %v1225
        %v1227 = vpop.f32.mrf.mxu0
        %v1228 = vadd.f32 %v410, %v1227
        %1229 = vmatmul.bf16.gmra.mxu0 %v600
        %v1230 = vpop.f32.mrf.mxu0
        %v1231 = vadd.f32 %v410, %v1230
        %v1232 = vpop.f32.mrf.mxu0
        %v1233 = vadd.f32 %v410, %v1232
        %1234 = vmatmul.bf16.gmra.mxu0 %v603
        %v1235 = vpop.f32.mrf.mxu0
        %v1236 = vadd.f32 %v410, %v1235
        %v1237 = vpop.f32.mrf.mxu0
        %v1238 = vadd.f32 %v410, %v1237
        %1239 = vmatmul.bf16.gmra.mxu0 %v606
        %v1240 = vpop.f32.mrf.mxu0
        %v1241 = vadd.f32 %v410, %v1240
        %v1242 = vpop.f32.mrf.mxu0
        %v1243 = vadd.f32 %v410, %v1242
        %1244 = vmatmul.bf16.gmra.mxu0 %v609
        %v1245 = vpop.f32.mrf.mxu0
        %v1246 = vadd.f32 %v410, %v1245
        %v1247 = vpop.f32.mrf.mxu0
        %v1248 = vadd.f32 %v410, %v1247
        %1249 = vmatmul.bf16.gmra.mxu0 %v612
        %v1250 = vpop.f32.mrf.mxu0
        %v1251 = vadd.f32 %v410, %v1250
        %v1252 = vpop.f32.mrf.mxu0
        %v1253 = vadd.f32 %v410, %v1252
        %1254 = vmatmul.bf16.gmra.mxu0 %v615
        %v1255 = vpop.f32.mrf.mxu0
        %v1256 = vadd.f32 %v410, %v1255
        %v1257 = vpop.f32.mrf.mxu0
        %v1258 = vadd.f32 %v410, %v1257
        %1259 = vmatmul.bf16.gmra.mxu0 %v618
        %v1260 = vpop.f32.mrf.mxu0
        %v1261 = vadd.f32 %v410, %v1260
        %v1262 = vpop.f32.mrf.mxu0
        %v1263 = vadd.f32 %v410, %v1262
        %1264 = vdwg.mxu0
        %1265 = vmatpush.bf16.msra.mxu0 %v844
        %1266 = vmatpush.bf16.msra.mxu0 %v842
        %1267 = vmatpush.bf16.msra.mxu0 %v840
        %1268 = vmatpush.bf16.msra.mxu0 %v838
        %1269 = vmatpush.bf16.msra.mxu0 %v836
        %1270 = vmatpush.bf16.msra.mxu0 %v834
        %1271 = vmatpush.bf16.msra.mxu0 %v832
        %1272 = vmatpush.bf16.msra.mxu0 %v830
        %1273 = vmatmul.bf16.gmra.mxu0 %v574
        %v1274 = vpop.f32.mrf.mxu0
        %v1275 = vadd.f32 %v1186, %v1274
        %v1276 = vpop.f32.mrf.mxu0
        %v1277 = vadd.f32 %v1188, %v1276
        %1278 = vmatmul.bf16.gmra.mxu0 %v577
        %v1279 = vpop.f32.mrf.mxu0
        %v1280 = vadd.f32 %v1191, %v1279
        %v1281 = vpop.f32.mrf.mxu0
        %v1282 = vadd.f32 %v1193, %v1281
        %1283 = vmatmul.bf16.gmra.mxu0 %v580
        %v1284 = vpop.f32.mrf.mxu0
        %v1285 = vadd.f32 %v1196, %v1284
        %v1286 = vpop.f32.mrf.mxu0
        %v1287 = vadd.f32 %v1198, %v1286
        %1288 = vmatmul.bf16.gmra.mxu0 %v583
        %v1289 = vpop.f32.mrf.mxu0
        %v1290 = vadd.f32 %v1201, %v1289
        %v1291 = vpop.f32.mrf.mxu0
        %v1292 = vadd.f32 %v1203, %v1291
        %1293 = vmatmul.bf16.gmra.mxu0 %v586
        %v1294 = vpop.f32.mrf.mxu0
        %v1295 = vadd.f32 %v1206, %v1294
        %v1296 = vpop.f32.mrf.mxu0
        %v1297 = vadd.f32 %v1208, %v1296
        %1298 = vmatmul.bf16.gmra.mxu0 %v589
        %v1299 = vpop.f32.mrf.mxu0
        %v1300 = vadd.f32 %v1211, %v1299
        %v1301 = vpop.f32.mrf.mxu0
        %v1302 = vadd.f32 %v1213, %v1301
        %1303 = vmatmul.bf16.gmra.mxu0 %v592
        %v1304 = vpop.f32.mrf.mxu0
        %v1305 = vadd.f32 %v1216, %v1304
        %v1306 = vpop.f32.mrf.mxu0
        %v1307 = vadd.f32 %v1218, %v1306
        %1308 = vmatmul.bf16.gmra.mxu0 %v595
        %v1309 = vpop.f32.mrf.mxu0
        %v1310 = vadd.f32 %v1221, %v1309
        %v1311 = vpop.f32.mrf.mxu0
        %v1312 = vadd.f32 %v1223, %v1311
        %1313 = vmatmul.bf16.gmra.mxu0 %v598
        %v1314 = vpop.f32.mrf.mxu0
        %v1315 = vadd.f32 %v1226, %v1314
        %v1316 = vpop.f32.mrf.mxu0
        %v1317 = vadd.f32 %v1228, %v1316
        %1318 = vmatmul.bf16.gmra.mxu0 %v601
        %v1319 = vpop.f32.mrf.mxu0
        %v1320 = vadd.f32 %v1231, %v1319
        %v1321 = vpop.f32.mrf.mxu0
        %v1322 = vadd.f32 %v1233, %v1321
        %1323 = vmatmul.bf16.gmra.mxu0 %v604
        %v1324 = vpop.f32.mrf.mxu0
        %v1325 = vadd.f32 %v1236, %v1324
        %v1326 = vpop.f32.mrf.mxu0
        %v1327 = vadd.f32 %v1238, %v1326
        %1328 = vmatmul.bf16.gmra.mxu0 %v607
        %v1329 = vpop.f32.mrf.mxu0
        %v1330 = vadd.f32 %v1241, %v1329
        %v1331 = vpop.f32.mrf.mxu0
        %v1332 = vadd.f32 %v1243, %v1331
        %1333 = vmatmul.bf16.gmra.mxu0 %v610
        %v1334 = vpop.f32.mrf.mxu0
        %v1335 = vadd.f32 %v1246, %v1334
        %v1336 = vpop.f32.mrf.mxu0
        %v1337 = vadd.f32 %v1248, %v1336
        %1338 = vmatmul.bf16.gmra.mxu0 %v613
        %v1339 = vpop.f32.mrf.mxu0
        %v1340 = vadd.f32 %v1251, %v1339
        %v1341 = vpop.f32.mrf.mxu0
        %v1342 = vadd.f32 %v1253, %v1341
        %1343 = vmatmul.bf16.gmra.mxu0 %v616
        %v1344 = vpop.f32.mrf.mxu0
        %v1345 = vadd.f32 %v1256, %v1344
        %v1346 = vpop.f32.mrf.mxu0
        %v1347 = vadd.f32 %v1258, %v1346
        %1348 = vmatmul.bf16.gmra.mxu0 %v619
        %v1349 = vpop.f32.mrf.mxu0
        %v1350 = vadd.f32 %v1261, %v1349
        %v1351 = vpop.f32.mrf.mxu0
        %v1352 = vadd.f32 %v1263, %v1351
        %1353 = vdwg.mxu0
        %1354 = vmatpush.bf16.msra.mxu0 %v860
        %1355 = vmatpush.bf16.msra.mxu0 %v858
        %1356 = vmatpush.bf16.msra.mxu0 %v856
        %1357 = vmatpush.bf16.msra.mxu0 %v854
        %1358 = vmatpush.bf16.msra.mxu0 %v852
        %1359 = vmatpush.bf16.msra.mxu0 %v850
        %1360 = vmatpush.bf16.msra.mxu0 %v848
        %1361 = vmatpush.bf16.msra.mxu0 %v846
        %1362 = vmatmul.bf16.gmra.mxu0 %v575
        %v1363 = vpop.f32.mrf.mxu0
        %v1364 = vadd.f32 %v1275, %v1363
        %v1365 = vpop.f32.mrf.mxu0
        %v1366 = vadd.f32 %v1277, %v1365
        %1367 = vmatmul.bf16.gmra.mxu0 %v578
        %v1368 = vpop.f32.mrf.mxu0
        %v1369 = vadd.f32 %v1280, %v1368
        %v1370 = vpop.f32.mrf.mxu0
        %v1371 = vadd.f32 %v1282, %v1370
        %1372 = vmatmul.bf16.gmra.mxu0 %v581
        %v1373 = vpop.f32.mrf.mxu0
        %v1374 = vadd.f32 %v1285, %v1373
        %v1375 = vpop.f32.mrf.mxu0
        %v1376 = vadd.f32 %v1287, %v1375
        %1377 = vmatmul.bf16.gmra.mxu0 %v584
        %v1378 = vpop.f32.mrf.mxu0
        %v1379 = vadd.f32 %v1290, %v1378
        %v1380 = vpop.f32.mrf.mxu0
        %v1381 = vadd.f32 %v1292, %v1380
        %1382 = vmatmul.bf16.gmra.mxu0 %v587
        %v1383 = vpop.f32.mrf.mxu0
        %v1384 = vadd.f32 %v1295, %v1383
        %v1385 = vpop.f32.mrf.mxu0
        %v1386 = vadd.f32 %v1297, %v1385
        %1387 = vmatmul.bf16.gmra.mxu0 %v590
        %v1388 = vpop.f32.mrf.mxu0
        %v1389 = vadd.f32 %v1300, %v1388
        %v1390 = vpop.f32.mrf.mxu0
        %v1391 = vadd.f32 %v1302, %v1390
        %1392 = vmatmul.bf16.gmra.mxu0 %v593
        %v1393 = vpop.f32.mrf.mxu0
        %v1394 = vadd.f32 %v1305, %v1393
        %v1395 = vpop.f32.mrf.mxu0
        %v1396 = vadd.f32 %v1307, %v1395
        %1397 = vmatmul.bf16.gmra.mxu0 %v596
        %v1398 = vpop.f32.mrf.mxu0
        %v1399 = vadd.f32 %v1310, %v1398
        %v1400 = vpop.f32.mrf.mxu0
        %v1401 = vadd.f32 %v1312, %v1400
        %1402 = vmatmul.bf16.gmra.mxu0 %v599
        %v1403 = vpop.f32.mrf.mxu0
        %v1404 = vadd.f32 %v1315, %v1403
        %v1405 = vpop.f32.mrf.mxu0
        %v1406 = vadd.f32 %v1317, %v1405
        %1407 = vmatmul.bf16.gmra.mxu0 %v602
        %v1408 = vpop.f32.mrf.mxu0
        %v1409 = vadd.f32 %v1320, %v1408
        %v1410 = vpop.f32.mrf.mxu0
        %v1411 = vadd.f32 %v1322, %v1410
        %1412 = vmatmul.bf16.gmra.mxu0 %v605
        %v1413 = vpop.f32.mrf.mxu0
        %v1414 = vadd.f32 %v1325, %v1413
        %v1415 = vpop.f32.mrf.mxu0
        %v1416 = vadd.f32 %v1327, %v1415
        %1417 = vmatmul.bf16.gmra.mxu0 %v608
        %v1418 = vpop.f32.mrf.mxu0
        %v1419 = vadd.f32 %v1330, %v1418
        %v1420 = vpop.f32.mrf.mxu0
        %v1421 = vadd.f32 %v1332, %v1420
        %1422 = vmatmul.bf16.gmra.mxu0 %v611
        %v1423 = vpop.f32.mrf.mxu0
        %v1424 = vadd.f32 %v1335, %v1423
        %v1425 = vpop.f32.mrf.mxu0
        %v1426 = vadd.f32 %v1337, %v1425
        %1427 = vmatmul.bf16.gmra.mxu0 %v614
        %v1428 = vpop.f32.mrf.mxu0
        %v1429 = vadd.f32 %v1340, %v1428
        %v1430 = vpop.f32.mrf.mxu0
        %v1431 = vadd.f32 %v1342, %v1430
        %1432 = vmatmul.bf16.gmra.mxu0 %v617
        %v1433 = vpop.f32.mrf.mxu0
        %v1434 = vadd.f32 %v1345, %v1433
        %v1435 = vpop.f32.mrf.mxu0
        %v1436 = vadd.f32 %v1347, %v1435
        %1437 = vmatmul.bf16.gmra.mxu0 %v620
        %v1438 = vpop.f32.mrf.mxu0
        %v1439 = vadd.f32 %v1350, %v1438
        %v1440 = vpop.f32.mrf.mxu0
        %v1441 = vadd.f32 %v1352, %v1440
        %1442 = vdwg.mxu0
        %v1443 = vpack.c.bf16 %v1364, %v1097
        %v1444 = vpack.c.bf16 %v1366, %v1099
        %v1445 = vpack.c.bf16 %v1369, %v1102
        %v1446 = vpack.c.bf16 %v1371, %v1104
        %v1447 = vpack.c.bf16 %v1374, %v1107
        %v1448 = vpack.c.bf16 %v1376, %v1109
        %v1449 = vpack.c.bf16 %v1379, %v1112
        %v1450 = vpack.c.bf16 %v1381, %v1114
        %v1451 = vpack.c.bf16 %v1384, %v1117
        %v1452 = vpack.c.bf16 %v1386, %v1119
        %v1453 = vpack.c.bf16 %v1389, %v1122
        %v1454 = vpack.c.bf16 %v1391, %v1124
        %v1455 = vpack.c.bf16 %v1394, %v1127
        %v1456 = vpack.c.bf16 %v1396, %v1129
        %v1457 = vpack.c.bf16 %v1399, %v1132
        %v1458 = vpack.c.bf16 %v1401, %v1134
        %v1459 = vpack.c.bf16 %v1404, %v1137
        %v1460 = vpack.c.bf16 %v1406, %v1139
        %v1461 = vpack.c.bf16 %v1409, %v1142
        %v1462 = vpack.c.bf16 %v1411, %v1144
        %v1463 = vpack.c.bf16 %v1414, %v1147
        %v1464 = vpack.c.bf16 %v1416, %v1149
        %v1465 = vpack.c.bf16 %v1419, %v1152
        %v1466 = vpack.c.bf16 %v1421, %v1154
        %v1467 = vpack.c.bf16 %v1424, %v1157
        %v1468 = vpack.c.bf16 %v1426, %v1159
        %v1469 = vpack.c.bf16 %v1429, %v1162
        %v1470 = vpack.c.bf16 %v1431, %v1164
        %v1471 = vpack.c.bf16 %v1434, %v1167
        %v1472 = vpack.c.bf16 %v1436, %v1169
        %v1473 = vpack.c.bf16 %v1439, %v1172
        %v1474 = vpack.c.bf16 %v1441, %v1174
        %v1507 = vrot.slane %v1443, 4
        %v1508 = vrot.slane %v1444, 4
        %v1509 = vrot.slane %v1445, 4
        %v1510 = vrot.slane %v1446, 4
        %v1511 = vrot.slane %v1447, 4
        %v1512 = vrot.slane %v1448, 4
        %v1513 = vrot.slane %v1449, 4
        %v1514 = vrot.slane %v1450, 4
        %v1515 = vrot.slane %v1451, 4
        %v1516 = vrot.slane %v1452, 4
        %v1517 = vrot.slane %v1453, 4
        %v1518 = vrot.slane %v1454, 4
        %v1519 = vrot.slane %v1455, 4
        %v1520 = vrot.slane %v1456, 4
        %v1521 = vrot.slane %v1457, 4
        %v1522 = vrot.slane %v1458, 4
        %v1523 = vrot.slane %v1459, 4
        %v1524 = vrot.slane %v1460, 4
        %v1525 = vrot.slane %v1461, 4
        %v1526 = vrot.slane %v1462, 4
        %v1527 = vrot.slane %v1463, 4
        %v1528 = vrot.slane %v1464, 4
        %v1529 = vrot.slane %v1465, 4
        %v1530 = vrot.slane %v1466, 4
        %v1531 = vrot.slane %v1467, 4
        %v1532 = vrot.slane %v1468, 4
        %v1533 = vrot.slane %v1469, 4
        %v1534 = vrot.slane %v1470, 4
        %v1535 = vrot.slane %v1471, 4
        %v1536 = vrot.slane %v1472, 4
        %v1537 = vrot.slane %v1473, 4
        %v1538 = vrot.slane %v1474, 4
        %v1539 = vunpack.c.l.b16 %v1443
        %v1540 = vunpack.c.l.b16 %v1444
        %v1541 = vunpack.c.l.b16 %v1445
        %v1542 = vunpack.c.l.b16 %v1446
        %v1543 = vunpack.c.l.b16 %v1447
        %v1544 = vunpack.c.l.b16 %v1448
        %v1545 = vunpack.c.l.b16 %v1449
        %v1546 = vunpack.c.l.b16 %v1450
        %v1547 = vpack.c.b16 %v1540, %v1539
        %v1548 = vpack.c.b16 %v1542, %v1541
        %v1549 = vpack.c.b16 %v1544, %v1543
        %v1550 = vpack.c.b16 %v1546, %v1545
        %1551 = vrot.lane.b32.xlu0 %v1547, 64
        %v1552 = vpop.permute.xlu0 %1551
        %1553 = vrot.lane.b32.xlu0 %v1548, 64
        %v1554 = vpop.permute.xlu0 %1553
        %1555 = vrot.lane.b32.xlu0 %v1549, 64
        %v1556 = vpop.permute.xlu0 %1555
        %1557 = vrot.lane.b32.xlu0 %v1550, 64
        %v1558 = vpop.permute.xlu0 %1557
        %vm1559 = vcmask 523264
        %v1561 = vsel %vm1559, %v1547, 0
        %v1564 = vsel %vm1559, %v1548, 0
        %v1567 = vsel %vm1559, %v1549, 0
        %v1570 = vsel %vm1559, %v1550, 0
        %v1573 = vsel %vm1559, %v1552, 0
        %v1576 = vsel %vm1559, %v1554, 0
        %v1579 = vsel %vm1559, %v1556, 0
        %v1582 = vsel %vm1559, %v1558, 0
        %1584 = vmatpush.bf16.xpose.msra.mxu0 0
        %1585 = vmatpush.bf16.xpose.msra.mxu0 0
        %1586 = vmatpush.bf16.xpose.msra.mxu0 0
        %1587 = vmatpush.bf16.xpose.msra.mxu0 0
        %1588 = vmatpush.bf16.xpose.msra.mxu0 %v1582
        %1589 = vmatpush.bf16.xpose.msra.mxu0 %v1579
        %1590 = vmatpush.bf16.xpose.msra.mxu0 %v1576
        %1591 = vmatpush.bf16.xpose.msra.mxu0 %v1573
        %1592 = vmatmul.bf16.gmra.mxu0 %v1561
        %v1593 = vpop.f32.mrf.mxu0
        %v1594 = vadd.f32 0.0, %v1593
        %v1595 = vpop.f32.mrf.mxu0
        %v1596 = vadd.f32 0.0, %v1595
        %1597 = vmatmul.bf16.gmra.mxu0 %v1564
        %v1598 = vpop.f32.mrf.mxu0
        %v1599 = vadd.f32 0.0, %v1598
        %v1600 = vpop.f32.mrf.mxu0
        %v1601 = vadd.f32 0.0, %v1600
        %1602 = vmatmul.bf16.gmra.mxu0 %v1567
        %v1603 = vpop.f32.mrf.mxu0
        %v1604 = vadd.f32 0.0, %v1603
        %v1605 = vpop.f32.mrf.mxu0
        %v1606 = vadd.f32 0.0, %v1605
        %1607 = vmatmul.bf16.gmra.mxu0 %v1570
        %v1608 = vpop.f32.mrf.mxu0
        %v1609 = vadd.f32 0.0, %v1608
        %v1610 = vpop.f32.mrf.mxu0
        %v1611 = vadd.f32 0.0, %v1610
        %1612 = vdwg.mxu0
        %v1613 = vunpack.c.l.b16 %v1459
        %v1614 = vunpack.c.l.b16 %v1460
        %v1615 = vunpack.c.l.b16 %v1461
        %v1616 = vunpack.c.l.b16 %v1462
        %v1617 = vunpack.c.l.b16 %v1463
        %v1618 = vunpack.c.l.b16 %v1464
        %v1619 = vunpack.c.l.b16 %v1465
        %v1620 = vunpack.c.l.b16 %v1466
        %v1621 = vpack.c.b16 %v1614, %v1613
        %v1622 = vpack.c.b16 %v1616, %v1615
        %v1623 = vpack.c.b16 %v1618, %v1617
        %v1624 = vpack.c.b16 %v1620, %v1619
        %1625 = vrot.lane.b32.xlu0 %v1621, 64
        %v1626 = vpop.permute.xlu0 %1625
        %1627 = vrot.lane.b32.xlu0 %v1622, 64
        %v1628 = vpop.permute.xlu0 %1627
        %1629 = vrot.lane.b32.xlu0 %v1623, 64
        %v1630 = vpop.permute.xlu0 %1629
        %1631 = vrot.lane.b32.xlu0 %v1624, 64
        %v1632 = vpop.permute.xlu0 %1631
        %v1634 = vsel %vm1559, %v1621, 0
        %v1637 = vsel %vm1559, %v1622, 0
        %v1640 = vsel %vm1559, %v1623, 0
        %v1643 = vsel %vm1559, %v1624, 0
        %v1646 = vsel %vm1559, %v1626, 0
        %v1649 = vsel %vm1559, %v1628, 0
        %v1652 = vsel %vm1559, %v1630, 0
        %v1655 = vsel %vm1559, %v1632, 0
        %1657 = vmatpush.bf16.xpose.msra.mxu0 0
        %1658 = vmatpush.bf16.xpose.msra.mxu0 0
        %1659 = vmatpush.bf16.xpose.msra.mxu0 0
        %1660 = vmatpush.bf16.xpose.msra.mxu0 0
        %1661 = vmatpush.bf16.xpose.msra.mxu0 %v1655
        %1662 = vmatpush.bf16.xpose.msra.mxu0 %v1652
        %1663 = vmatpush.bf16.xpose.msra.mxu0 %v1649
        %1664 = vmatpush.bf16.xpose.msra.mxu0 %v1646
        %1665 = vmatmul.bf16.gmra.mxu0 %v1634
        %v1666 = vpop.f32.mrf.mxu0
        %v1667 = vadd.f32 0.0, %v1666
        %v1668 = vpop.f32.mrf.mxu0
        %v1669 = vadd.f32 0.0, %v1668
        %1670 = vmatmul.bf16.gmra.mxu0 %v1637
        %v1671 = vpop.f32.mrf.mxu0
        %v1672 = vadd.f32 0.0, %v1671
        %v1673 = vpop.f32.mrf.mxu0
        %v1674 = vadd.f32 0.0, %v1673
        %1675 = vmatmul.bf16.gmra.mxu0 %v1640
        %v1676 = vpop.f32.mrf.mxu0
        %v1677 = vadd.f32 0.0, %v1676
        %v1678 = vpop.f32.mrf.mxu0
        %v1679 = vadd.f32 0.0, %v1678
        %1680 = vmatmul.bf16.gmra.mxu0 %v1643
        %v1681 = vpop.f32.mrf.mxu0
        %v1682 = vadd.f32 0.0, %v1681
        %v1683 = vpop.f32.mrf.mxu0
        %v1684 = vadd.f32 0.0, %v1683
        %1685 = vdwg.mxu0
        %v1686 = vlaneseq
        %v1687 = vshrl.u32 %v1686, 7
        %v1688 = vadd.s32 %v1687, 8
        %v1689 = vadd.s32 %v1687, 16
        %v1690 = vadd.s32 %v1687, 24
        %v1691 = vadd.s32 %v1687, 32
        %v1692 = vadd.s32 %v1687, 40
        %v1693 = vadd.s32 %v1687, 48
        %v1694 = vadd.s32 %v1687, 56
        %v1695 = vlaneseq
        %v1696 = vand.u32 %v1695, 127
        %vm1697 = vcmp.le.s32.totalorder %v1696, %v1687
        %vm1698 = vcmp.le.s32.totalorder %v1696, %v1688
        %vm1699 = vcmp.le.s32.totalorder %v1696, %v1689
        %vm1700 = vcmp.le.s32.totalorder %v1696, %v1690
        %vm1701 = vcmp.le.s32.totalorder %v1696, %v1691
        %vm1702 = vcmp.le.s32.totalorder %v1696, %v1692
        %vm1703 = vcmp.le.s32.totalorder %v1696, %v1693
        %vm1704 = vcmp.le.s32.totalorder %v1696, %v1694
        %v1705 = vsel %vm1697, 1, 0
        %v1706 = vsel %vm1698, 1, 0
        %v1707 = vsel %vm1699, 1, 0
        %v1708 = vsel %vm1700, 1, 0
        %v1709 = vsel %vm1701, 1, 0
        %v1710 = vsel %vm1702, 1, 0
        %v1711 = vsel %vm1703, 1, 0
        %v1712 = vsel %vm1704, 1, 0
        %vm1713 = vcmp.eq.s32.totalorder %v1705, 1
        %vm1714 = vcmp.eq.s32.totalorder %v1706, 1
        %vm1715 = vcmp.eq.s32.totalorder %v1707, 1
        %vm1716 = vcmp.eq.s32.totalorder %v1708, 1
        %vm1717 = vcmp.eq.s32.totalorder %v1709, 1
        %vm1718 = vcmp.eq.s32.totalorder %v1710, 1
        %vm1719 = vcmp.eq.s32.totalorder %v1711, 1
        %vm1720 = vcmp.eq.s32.totalorder %v1712, 1
        %v1721 = vsel %vm1713, %v1594, -inf
        %v1722 = vsel %vm1714, %v1596, -inf
        %v1723 = vsel %vm1715, %v1599, -inf
        %v1724 = vsel %vm1716, %v1601, -inf
        %v1725 = vsel %vm1717, %v1604, -inf
        %v1726 = vsel %vm1718, %v1606, -inf
        %v1727 = vsel %vm1719, %v1609, -inf
        %v1728 = vsel %vm1720, %v1611, -inf
        %v1729 = vsel %vm1713, %v1667, -inf
        %v1730 = vsel %vm1714, %v1669, -inf
        %v1731 = vsel %vm1715, %v1672, -inf
        %v1732 = vsel %vm1716, %v1674, -inf
        %v1733 = vsel %vm1717, %v1677, -inf
        %v1734 = vsel %vm1718, %v1679, -inf
        %v1735 = vsel %vm1719, %v1682, -inf
        %v1736 = vsel %vm1720, %v1684, -inf
        %v1737 = vsel %vm1559, %v1721, -inf
        %1738 = vmax.xlane.f32.xlu0 %v1737
        %v1739 = vpop.xlane.xlu0 %1738
        %v1740 = vsel %vm1559, %v1722, -inf
        %1741 = vmax.xlane.f32.xlu0 %v1740
        %v1742 = vpop.xlane.xlu0 %1741
        %v1743 = vsel %vm1559, %v1723, -inf
        %1744 = vmax.xlane.f32.xlu0 %v1743
        %v1745 = vpop.xlane.xlu0 %1744
        %v1746 = vsel %vm1559, %v1724, -inf
        %1747 = vmax.xlane.f32.xlu0 %v1746
        %v1748 = vpop.xlane.xlu0 %1747
        %v1749 = vsel %vm1559, %v1725, -inf
        %1750 = vmax.xlane.f32.xlu0 %v1749
        %v1751 = vpop.xlane.xlu0 %1750
        %v1752 = vsel %vm1559, %v1726, -inf
        %1753 = vmax.xlane.f32.xlu0 %v1752
        %v1754 = vpop.xlane.xlu0 %1753
        %v1755 = vsel %vm1559, %v1727, -inf
        %1756 = vmax.xlane.f32.xlu0 %v1755
        %v1757 = vpop.xlane.xlu0 %1756
        %v1758 = vsel %vm1559, %v1728, -inf
        %1759 = vmax.xlane.f32.xlu0 %v1758
        %v1760 = vpop.xlane.xlu0 %1759
        %v1761 = vsel %vm1559, %v1729, -inf
        %1762 = vmax.xlane.f32.xlu0 %v1761
        %v1763 = vpop.xlane.xlu0 %1762
        %v1764 = vsel %vm1559, %v1730, -inf
        %1765 = vmax.xlane.f32.xlu0 %v1764
        %v1766 = vpop.xlane.xlu0 %1765
        %v1767 = vsel %vm1559, %v1731, -inf
        %1768 = vmax.xlane.f32.xlu0 %v1767
        %v1769 = vpop.xlane.xlu0 %1768
        %v1770 = vsel %vm1559, %v1732, -inf
        %1771 = vmax.xlane.f32.xlu0 %v1770
        %v1772 = vpop.xlane.xlu0 %1771
        %v1773 = vsel %vm1559, %v1733, -inf
        %1774 = vmax.xlane.f32.xlu0 %v1773
        %v1775 = vpop.xlane.xlu0 %1774
        %v1776 = vsel %vm1559, %v1734, -inf
        %1777 = vmax.xlane.f32.xlu0 %v1776
        %v1778 = vpop.xlane.xlu0 %1777
        %v1779 = vsel %vm1559, %v1735, -inf
        %1780 = vmax.xlane.f32.xlu0 %v1779
        %v1781 = vpop.xlane.xlu0 %1780
        %v1782 = vsel %vm1559, %v1736, -inf
        %1783 = vmax.xlane.f32.xlu0 %v1782
        %v1784 = vpop.xlane.xlu0 %1783
        %v1785 = vsub.f32 %v1721, %v1739
        %v1786 = vsub.f32 %v1722, %v1742
        %v1787 = vsub.f32 %v1723, %v1745
        %v1788 = vsub.f32 %v1724, %v1748
        %v1789 = vsub.f32 %v1725, %v1751
        %v1790 = vsub.f32 %v1726, %v1754
        %v1791 = vsub.f32 %v1727, %v1757
        %v1792 = vsub.f32 %v1728, %v1760
        %v1793 = vsub.f32 %v1729, %v1763
        %v1794 = vsub.f32 %v1730, %v1766
        %v1795 = vsub.f32 %v1731, %v1769
        %v1796 = vsub.f32 %v1732, %v1772
        %v1797 = vsub.f32 %v1733, %v1775
        %v1798 = vsub.f32 %v1734, %v1778
        %v1799 = vsub.f32 %v1735, %v1781
        %v1800 = vsub.f32 %v1736, %v1784
        %v1801 = vmul.f32 %v1785, 1.442695
        %v1802 = vpow.pop %v1801
        %v1803 = vmul.f32 %v1786, 1.442695
        %v1804 = vpow.pop %v1803
        %v1805 = vmul.f32 %v1787, 1.442695
        %v1806 = vpow.pop %v1805
        %v1807 = vmul.f32 %v1788, 1.442695
        %v1808 = vpow.pop %v1807
        %v1809 = vmul.f32 %v1789, 1.442695
        %v1810 = vpow.pop %v1809
        %v1811 = vmul.f32 %v1790, 1.442695
        %v1812 = vpow.pop %v1811
        %v1813 = vmul.f32 %v1791, 1.442695
        %v1814 = vpow.pop %v1813
        %v1815 = vmul.f32 %v1792, 1.442695
        %v1816 = vpow.pop %v1815
        %v1817 = vmul.f32 %v1793, 1.442695
        %v1818 = vpow.pop %v1817
        %v1819 = vmul.f32 %v1794, 1.442695
        %v1820 = vpow.pop %v1819
        %v1821 = vmul.f32 %v1795, 1.442695
        %v1822 = vpow.pop %v1821
        %v1823 = vmul.f32 %v1796, 1.442695
        %v1824 = vpow.pop %v1823
        %v1825 = vmul.f32 %v1797, 1.442695
        %v1826 = vpow.pop %v1825
        %v1827 = vmul.f32 %v1798, 1.442695
        %v1828 = vpow.pop %v1827
        %v1829 = vmul.f32 %v1799, 1.442695
        %v1830 = vpow.pop %v1829
        %v1831 = vmul.f32 %v1800, 1.442695
        %v1832 = vpow.pop %v1831
        %v1833 = vsel %vm1559, %v1802, 0.0
        %1834 = vadd.xlane.f32.xlu0 %v1833
        %v1835 = vpop.xlane.xlu0 %1834
        %v1836 = vsel %vm1559, %v1804, 0.0
        %1837 = vadd.xlane.f32.xlu0 %v1836
        %v1838 = vpop.xlane.xlu0 %1837
        %v1839 = vsel %vm1559, %v1806, 0.0
        %1840 = vadd.xlane.f32.xlu0 %v1839
        %v1841 = vpop.xlane.xlu0 %1840
        %v1842 = vsel %vm1559, %v1808, 0.0
        %1843 = vadd.xlane.f32.xlu0 %v1842
        %v1844 = vpop.xlane.xlu0 %1843
        %v1845 = vsel %vm1559, %v1810, 0.0
        %1846 = vadd.xlane.f32.xlu0 %v1845
        %v1847 = vpop.xlane.xlu0 %1846
        %v1848 = vsel %vm1559, %v1812, 0.0
        %1849 = vadd.xlane.f32.xlu0 %v1848
        %v1850 = vpop.xlane.xlu0 %1849
        %v1851 = vsel %vm1559, %v1814, 0.0
        %1852 = vadd.xlane.f32.xlu0 %v1851
        %v1853 = vpop.xlane.xlu0 %1852
        %v1854 = vsel %vm1559, %v1816, 0.0
        %1855 = vadd.xlane.f32.xlu0 %v1854
        %v1856 = vpop.xlane.xlu0 %1855
        %v1857 = vsel %vm1559, %v1818, 0.0
        %1858 = vadd.xlane.f32.xlu0 %v1857
        %v1859 = vpop.xlane.xlu0 %1858
        %v1860 = vsel %vm1559, %v1820, 0.0
        %1861 = vadd.xlane.f32.xlu0 %v1860
        %v1862 = vpop.xlane.xlu0 %1861
        %v1863 = vsel %vm1559, %v1822, 0.0
        %1864 = vadd.xlane.f32.xlu0 %v1863
        %v1865 = vpop.xlane.xlu0 %1864
        %v1866 = vsel %vm1559, %v1824, 0.0
        %1867 = vadd.xlane.f32.xlu0 %v1866
        %v1868 = vpop.xlane.xlu0 %1867
        %v1869 = vsel %vm1559, %v1826, 0.0
        %1870 = vadd.xlane.f32.xlu0 %v1869
        %v1871 = vpop.xlane.xlu0 %1870
        %v1872 = vsel %vm1559, %v1828, 0.0
        %1873 = vadd.xlane.f32.xlu0 %v1872
        %v1874 = vpop.xlane.xlu0 %1873
        %v1875 = vsel %vm1559, %v1830, 0.0
        %1876 = vadd.xlane.f32.xlu0 %v1875
        %v1877 = vpop.xlane.xlu0 %1876
        %v1878 = vsel %vm1559, %v1832, 0.0
        %1879 = vadd.xlane.f32.xlu0 %v1878
        %v1880 = vpop.xlane.xlu0 %1879
        %v1881 = vrcp.pop %v1835
        %v1882 = vrcp.pop %v1838
        %v1883 = vrcp.pop %v1841
        %v1884 = vrcp.pop %v1844
        %v1885 = vrcp.pop %v1847
        %v1886 = vrcp.pop %v1850
        %v1887 = vrcp.pop %v1853
        %v1888 = vrcp.pop %v1856
        %v1889 = vrcp.pop %v1859
        %v1890 = vrcp.pop %v1862
        %v1891 = vrcp.pop %v1865
        %v1892 = vrcp.pop %v1868
        %v1893 = vrcp.pop %v1871
        %v1894 = vrcp.pop %v1874
        %v1895 = vrcp.pop %v1877
        %v1896 = vrcp.pop %v1880
        %v1897 = vmul.f32 %v1802, %v1881
        %v1898 = vmul.f32 %v1804, %v1882
        %v1899 = vmul.f32 %v1806, %v1883
        %v1900 = vmul.f32 %v1808, %v1884
        %v1901 = vmul.f32 %v1810, %v1885
        %v1902 = vmul.f32 %v1812, %v1886
        %v1903 = vmul.f32 %v1814, %v1887
        %v1904 = vmul.f32 %v1816, %v1888
        %v1905 = vmul.f32 %v1818, %v1889
        %v1906 = vmul.f32 %v1820, %v1890
        %v1907 = vmul.f32 %v1822, %v1891
        %v1908 = vmul.f32 %v1824, %v1892
        %v1909 = vmul.f32 %v1826, %v1893
        %v1910 = vmul.f32 %v1828, %v1894
        %v1911 = vmul.f32 %v1830, %v1895
        %v1912 = vmul.f32 %v1832, %v1896
        %v1913 = vpack.c.bf16 %v1897, %v1897
        %v1914 = vpack.c.bf16 %v1898, %v1898
        %v1915 = vpack.c.bf16 %v1899, %v1899
        %v1916 = vpack.c.bf16 %v1900, %v1900
        %v1917 = vpack.c.bf16 %v1901, %v1901
        %v1918 = vpack.c.bf16 %v1902, %v1902
        %v1919 = vpack.c.bf16 %v1903, %v1903
        %v1920 = vpack.c.bf16 %v1904, %v1904
        %v1921 = vpack.c.bf16 %v1905, %v1905
        %v1922 = vpack.c.bf16 %v1906, %v1906
        %v1923 = vpack.c.bf16 %v1907, %v1907
        %v1924 = vpack.c.bf16 %v1908, %v1908
        %v1925 = vpack.c.bf16 %v1909, %v1909
        %v1926 = vpack.c.bf16 %v1910, %v1910
        %v1927 = vpack.c.bf16 %v1911, %v1911
        %v1928 = vpack.c.bf16 %v1912, %v1912
        %v1937 = vunpack.c.l.b16 %v1913
        %v1938 = vunpack.c.l.b16 %v1914
        %v1939 = vunpack.c.l.b16 %v1915
        %v1940 = vunpack.c.l.b16 %v1916
        %v1941 = vunpack.c.l.b16 %v1917
        %v1942 = vunpack.c.l.b16 %v1918
        %v1943 = vunpack.c.l.b16 %v1919
        %v1944 = vunpack.c.l.b16 %v1920
        %v1945 = vpack.c.b16 %v1938, %v1937
        %v1946 = vpack.c.b16 %v1940, %v1939
        %v1947 = vpack.c.b16 %v1942, %v1941
        %v1948 = vpack.c.b16 %v1944, %v1943
        %v1949 = vunpack.c.l.b16 %v1507
        %v1950 = vunpack.c.l.b16 %v1508
        %v1951 = vunpack.c.l.b16 %v1509
        %v1952 = vunpack.c.l.b16 %v1510
        %v1953 = vunpack.c.l.b16 %v1511
        %v1954 = vunpack.c.l.b16 %v1512
        %v1955 = vunpack.c.l.b16 %v1513
        %v1956 = vunpack.c.l.b16 %v1514
        %v1957 = vpack.c.b16 %v1950, %v1949
        %v1958 = vpack.c.b16 %v1952, %v1951
        %v1959 = vpack.c.b16 %v1954, %v1953
        %v1960 = vpack.c.b16 %v1956, %v1955
        %v1966 = vsel %vm1559, %v1945, 0
        %v1969 = vsel %vm1559, %v1946, 0
        %v1972 = vsel %vm1559, %v1947, 0
        %v1975 = vsel %vm1559, %v1948, 0
        %1977 = vmatpush.bf16.msra.mxu0 0
        %1978 = vmatpush.bf16.msra.mxu0 0
        %1979 = vmatpush.bf16.msra.mxu0 0
        %1980 = vmatpush.bf16.msra.mxu0 0
        %1981 = vmatpush.bf16.msra.mxu0 %v1960
        %1982 = vmatpush.bf16.msra.mxu0 %v1959
        %1983 = vmatpush.bf16.msra.mxu0 %v1958
        %1984 = vmatpush.bf16.msra.mxu0 %v1957
        %1985 = vmatmul.bf16.gmra.mxu0 %v1966
        %v1986 = vpop.f32.mrf.mxu0
        %v1987 = vadd.f32 0.0, %v1986
        %v1988 = vpop.f32.mrf.mxu0
        %v1989 = vadd.f32 0.0, %v1988
        %1990 = vmatmul.bf16.gmra.mxu0 %v1969
        %v1991 = vpop.f32.mrf.mxu0
        %v1992 = vadd.f32 0.0, %v1991
        %v1993 = vpop.f32.mrf.mxu0
        %v1994 = vadd.f32 0.0, %v1993
        %1995 = vmatmul.bf16.gmra.mxu0 %v1972
        %v1996 = vpop.f32.mrf.mxu0
        %v1997 = vadd.f32 0.0, %v1996
        %v1998 = vpop.f32.mrf.mxu0
        %v1999 = vadd.f32 0.0, %v1998
        %2000 = vmatmul.bf16.gmra.mxu0 %v1975
        %v2001 = vpop.f32.mrf.mxu0
        %v2002 = vadd.f32 0.0, %v2001
        %v2003 = vpop.f32.mrf.mxu0
        %v2004 = vadd.f32 0.0, %v2003
        %2005 = vdwg.mxu0
        %v2014 = vunpack.c.l.b16 %v1921
        %v2015 = vunpack.c.l.b16 %v1922
        %v2016 = vunpack.c.l.b16 %v1923
        %v2017 = vunpack.c.l.b16 %v1924
        %v2018 = vunpack.c.l.b16 %v1925
        %v2019 = vunpack.c.l.b16 %v1926
        %v2020 = vunpack.c.l.b16 %v1927
        %v2021 = vunpack.c.l.b16 %v1928
        %v2022 = vpack.c.b16 %v2015, %v2014
        %v2023 = vpack.c.b16 %v2017, %v2016
        %v2024 = vpack.c.b16 %v2019, %v2018
        %v2025 = vpack.c.b16 %v2021, %v2020
        %v2026 = vunpack.c.l.b16 %v1523
        %v2027 = vunpack.c.l.b16 %v1524
        %v2028 = vunpack.c.l.b16 %v1525
        %v2029 = vunpack.c.l.b16 %v1526
        %v2030 = vunpack.c.l.b16 %v1527
        %v2031 = vunpack.c.l.b16 %v1528
        %v2032 = vunpack.c.l.b16 %v1529
        %v2033 = vunpack.c.l.b16 %v1530
        %v2034 = vpack.c.b16 %v2027, %v2026
        %v2035 = vpack.c.b16 %v2029, %v2028
        %v2036 = vpack.c.b16 %v2031, %v2030
        %v2037 = vpack.c.b16 %v2033, %v2032
        %v2043 = vsel %vm1559, %v2022, 0
        %v2046 = vsel %vm1559, %v2023, 0
        %v2049 = vsel %vm1559, %v2024, 0
        %v2052 = vsel %vm1559, %v2025, 0
        %2054 = vmatpush.bf16.msra.mxu0 0
        %2055 = vmatpush.bf16.msra.mxu0 0
        %2056 = vmatpush.bf16.msra.mxu0 0
        %2057 = vmatpush.bf16.msra.mxu0 0
        %2058 = vmatpush.bf16.msra.mxu0 %v2037
        %2059 = vmatpush.bf16.msra.mxu0 %v2036
        %2060 = vmatpush.bf16.msra.mxu0 %v2035
        %2061 = vmatpush.bf16.msra.mxu0 %v2034
        %2062 = vmatmul.bf16.gmra.mxu0 %v2043
        %v2063 = vpop.f32.mrf.mxu0
        %v2064 = vadd.f32 0.0, %v2063
        %v2065 = vpop.f32.mrf.mxu0
        %v2066 = vadd.f32 0.0, %v2065
        %2067 = vmatmul.bf16.gmra.mxu0 %v2046
        %v2068 = vpop.f32.mrf.mxu0
        %v2069 = vadd.f32 0.0, %v2068
        %v2070 = vpop.f32.mrf.mxu0
        %v2071 = vadd.f32 0.0, %v2070
        %2072 = vmatmul.bf16.gmra.mxu0 %v2049
        %v2073 = vpop.f32.mrf.mxu0
        %v2074 = vadd.f32 0.0, %v2073
        %v2075 = vpop.f32.mrf.mxu0
        %v2076 = vadd.f32 0.0, %v2075
        %2077 = vmatmul.bf16.gmra.mxu0 %v2052
        %v2078 = vpop.f32.mrf.mxu0
        %v2079 = vadd.f32 0.0, %v2078
        %v2080 = vpop.f32.mrf.mxu0
        %v2081 = vadd.f32 0.0, %v2080
        %2082 = vdwg.mxu0
        %2083 = vst.msk [vmem:[%s196] sm:$0xff] %vm1559, %v1987
        %2084 = vst.msk [vmem:[%s196 + $0x8] sm:$0xff] %vm1559, %v1989
        %2085 = vst.msk [vmem:[%s196 + $0x10] sm:$0xff] %vm1559, %v1992
        %2086 = vst.msk [vmem:[%s196 + $0x18] sm:$0xff] %vm1559, %v1994
        %2087 = vst.msk [vmem:[%s196 + $0x20] sm:$0xff] %vm1559, %v1997
        %2088 = vst.msk [vmem:[%s196 + $0x28] sm:$0xff] %vm1559, %v1999
        %2089 = vst.msk [vmem:[%s196 + $0x30] sm:$0xff] %vm1559, %v2002
        %2090 = vst.msk [vmem:[%s196 + $0x38] sm:$0xff] %vm1559, %v2004
        %2091 = vst.msk [vmem:[%s196 + $0x80] sm:$0xff] %vm1559, %v2064
        %2092 = vst.msk [vmem:[%s196 + $0x88] sm:$0xff] %vm1559, %v2066
        %2093 = vst.msk [vmem:[%s196 + $0x90] sm:$0xff] %vm1559, %v2069
        %2094 = vst.msk [vmem:[%s196 + $0x98] sm:$0xff] %vm1559, %v2071
        %2095 = vst.msk [vmem:[%s196 + $0xa0] sm:$0xff] %vm1559, %v2074
        %2096 = vst.msk [vmem:[%s196 + $0xa8] sm:$0xff] %vm1559, %v2076
        %2097 = vst.msk [vmem:[%s196 + $0xb0] sm:$0xff] %vm1559, %v2079
        %2098 = vst.msk [vmem:[%s196 + $0xb8] sm:$0xff] %vm1559, %v2081
        %v2099 = vunpack.c.l.b16 %v1451
        %v2100 = vunpack.c.l.b16 %v1452
        %v2101 = vunpack.c.l.b16 %v1453
        %v2102 = vunpack.c.l.b16 %v1454
        %v2103 = vunpack.c.l.b16 %v1455
        %v2104 = vunpack.c.l.b16 %v1456
        %v2105 = vunpack.c.l.b16 %v1457
        %v2106 = vunpack.c.l.b16 %v1458
        %v2107 = vpack.c.b16 %v2100, %v2099
        %v2108 = vpack.c.b16 %v2102, %v2101
        %v2109 = vpack.c.b16 %v2104, %v2103
        %v2110 = vpack.c.b16 %v2106, %v2105
        %2111 = vrot.lane.b32.xlu0 %v2107, 64
        %v2112 = vpop.permute.xlu0 %2111
        %2113 = vrot.lane.b32.xlu0 %v2108, 64
        %v2114 = vpop.permute.xlu0 %2113
        %2115 = vrot.lane.b32.xlu0 %v2109, 64
        %v2116 = vpop.permute.xlu0 %2115
        %2117 = vrot.lane.b32.xlu0 %v2110, 64
        %v2118 = vpop.permute.xlu0 %2117
        %v2120 = vsel %vm1559, %v2107, 0
        %v2123 = vsel %vm1559, %v2108, 0
        %v2126 = vsel %vm1559, %v2109, 0
        %v2129 = vsel %vm1559, %v2110, 0
        %v2132 = vsel %vm1559, %v2112, 0
        %v2135 = vsel %vm1559, %v2114, 0
        %v2138 = vsel %vm1559, %v2116, 0
        %v2141 = vsel %vm1559, %v2118, 0
        %2143 = vmatpush.bf16.xpose.msra.mxu0 %v2141
        %2144 = vmatpush.bf16.xpose.msra.mxu0 %v2138
        %2145 = vmatpush.bf16.xpose.msra.mxu0 %v2135
        %2146 = vmatpush.bf16.xpose.msra.mxu0 %v2132
        %2147 = vmatpush.bf16.xpose.msra.mxu0 %v1582
        %2148 = vmatpush.bf16.xpose.msra.mxu0 %v1579
        %2149 = vmatpush.bf16.xpose.msra.mxu0 %v1576
        %2150 = vmatpush.bf16.xpose.msra.mxu0 %v1573
        %2151 = vmatmul.bf16.gmra.mxu0 %v2120
        %v2152 = vpop.f32.mrf.mxu0
        %v2153 = vadd.f32 0.0, %v2152
        %v2154 = vpop.f32.mrf.mxu0
        %v2155 = vadd.f32 0.0, %v2154
        %2156 = vmatmul.bf16.gmra.mxu0 %v2123
        %v2157 = vpop.f32.mrf.mxu0
        %v2158 = vadd.f32 0.0, %v2157
        %v2159 = vpop.f32.mrf.mxu0
        %v2160 = vadd.f32 0.0, %v2159
        %2161 = vmatmul.bf16.gmra.mxu0 %v2126
        %v2162 = vpop.f32.mrf.mxu0
        %v2163 = vadd.f32 0.0, %v2162
        %v2164 = vpop.f32.mrf.mxu0
        %v2165 = vadd.f32 0.0, %v2164
        %2166 = vmatmul.bf16.gmra.mxu0 %v2129
        %v2167 = vpop.f32.mrf.mxu0
        %v2168 = vadd.f32 0.0, %v2167
        %v2169 = vpop.f32.mrf.mxu0
        %v2170 = vadd.f32 0.0, %v2169
        %2171 = vdwg.mxu0
        %v2172 = vunpack.c.l.b16 %v1467
        %v2173 = vunpack.c.l.b16 %v1468
        %v2174 = vunpack.c.l.b16 %v1469
        %v2175 = vunpack.c.l.b16 %v1470
        %v2176 = vunpack.c.l.b16 %v1471
        %v2177 = vunpack.c.l.b16 %v1472
        %v2178 = vunpack.c.l.b16 %v1473
        %v2179 = vunpack.c.l.b16 %v1474
        %v2180 = vpack.c.b16 %v2173, %v2172
        %v2181 = vpack.c.b16 %v2175, %v2174
        %v2182 = vpack.c.b16 %v2177, %v2176
        %v2183 = vpack.c.b16 %v2179, %v2178
        %2184 = vrot.lane.b32.xlu0 %v2180, 64
        %v2185 = vpop.permute.xlu0 %2184
        %2186 = vrot.lane.b32.xlu0 %v2181, 64
        %v2187 = vpop.permute.xlu0 %2186
        %2188 = vrot.lane.b32.xlu0 %v2182, 64
        %v2189 = vpop.permute.xlu0 %2188
        %2190 = vrot.lane.b32.xlu0 %v2183, 64
        %v2191 = vpop.permute.xlu0 %2190
        %v2193 = vsel %vm1559, %v2180, 0
        %v2196 = vsel %vm1559, %v2181, 0
        %v2199 = vsel %vm1559, %v2182, 0
        %v2202 = vsel %vm1559, %v2183, 0
        %v2205 = vsel %vm1559, %v2185, 0
        %v2208 = vsel %vm1559, %v2187, 0
        %v2211 = vsel %vm1559, %v2189, 0
        %v2214 = vsel %vm1559, %v2191, 0
        %2216 = vmatpush.bf16.xpose.msra.mxu0 %v2214
        %2217 = vmatpush.bf16.xpose.msra.mxu0 %v2211
        %2218 = vmatpush.bf16.xpose.msra.mxu0 %v2208
        %2219 = vmatpush.bf16.xpose.msra.mxu0 %v2205
        %2220 = vmatpush.bf16.xpose.msra.mxu0 %v1655
        %2221 = vmatpush.bf16.xpose.msra.mxu0 %v1652
        %2222 = vmatpush.bf16.xpose.msra.mxu0 %v1649
        %2223 = vmatpush.bf16.xpose.msra.mxu0 %v1646
        %2224 = vmatmul.bf16.gmra.mxu0 %v2193
        %v2225 = vpop.f32.mrf.mxu0
        %v2226 = vadd.f32 0.0, %v2225
        %v2227 = vpop.f32.mrf.mxu0
        %v2228 = vadd.f32 0.0, %v2227
        %2229 = vmatmul.bf16.gmra.mxu0 %v2196
        %v2230 = vpop.f32.mrf.mxu0
        %v2231 = vadd.f32 0.0, %v2230
        %v2232 = vpop.f32.mrf.mxu0
        %v2233 = vadd.f32 0.0, %v2232
        %2234 = vmatmul.bf16.gmra.mxu0 %v2199
        %v2235 = vpop.f32.mrf.mxu0
        %v2236 = vadd.f32 0.0, %v2235
        %v2237 = vpop.f32.mrf.mxu0
        %v2238 = vadd.f32 0.0, %v2237
        %2239 = vmatmul.bf16.gmra.mxu0 %v2202
        %v2240 = vpop.f32.mrf.mxu0
        %v2241 = vadd.f32 0.0, %v2240
        %v2242 = vpop.f32.mrf.mxu0
        %v2243 = vadd.f32 0.0, %v2242
        %2244 = vdwg.mxu0
        %v2245 = vadd.s32 %v1687, 64
        %v2246 = vadd.s32 %v1688, 64
        %v2247 = vadd.s32 %v1689, 64
        %v2248 = vadd.s32 %v1690, 64
        %v2249 = vadd.s32 %v1691, 64
        %v2250 = vadd.s32 %v1692, 64
        %v2251 = vadd.s32 %v1693, 64
        %v2252 = vadd.s32 %v1694, 64
        %vm2253 = vcmp.le.s32.totalorder %v1696, %v2245
        %vm2254 = vcmp.le.s32.totalorder %v1696, %v2246
        %vm2255 = vcmp.le.s32.totalorder %v1696, %v2247
        %vm2256 = vcmp.le.s32.totalorder %v1696, %v2248
        %vm2257 = vcmp.le.s32.totalorder %v1696, %v2249
        %vm2258 = vcmp.le.s32.totalorder %v1696, %v2250
        %vm2259 = vcmp.le.s32.totalorder %v1696, %v2251
        %vm2260 = vcmp.le.s32.totalorder %v1696, %v2252
        %v2261 = vsel %vm2253, 1, 0
        %v2262 = vsel %vm2254, 1, 0
        %v2263 = vsel %vm2255, 1, 0
        %v2264 = vsel %vm2256, 1, 0
        %v2265 = vsel %vm2257, 1, 0
        %v2266 = vsel %vm2258, 1, 0
        %v2267 = vsel %vm2259, 1, 0
        %v2268 = vsel %vm2260, 1, 0
        %vm2269 = vcmp.eq.s32.totalorder %v2261, 1
        %vm2270 = vcmp.eq.s32.totalorder %v2262, 1
        %vm2271 = vcmp.eq.s32.totalorder %v2263, 1
        %vm2272 = vcmp.eq.s32.totalorder %v2264, 1
        %vm2273 = vcmp.eq.s32.totalorder %v2265, 1
        %vm2274 = vcmp.eq.s32.totalorder %v2266, 1
        %vm2275 = vcmp.eq.s32.totalorder %v2267, 1
        %vm2276 = vcmp.eq.s32.totalorder %v2268, 1
        %v2277 = vsel %vm2269, %v2153, -inf
        %v2278 = vsel %vm2270, %v2155, -inf
        %v2279 = vsel %vm2271, %v2158, -inf
        %v2280 = vsel %vm2272, %v2160, -inf
        %v2281 = vsel %vm2273, %v2163, -inf
        %v2282 = vsel %vm2274, %v2165, -inf
        %v2283 = vsel %vm2275, %v2168, -inf
        %v2284 = vsel %vm2276, %v2170, -inf
        %v2285 = vsel %vm2269, %v2226, -inf
        %v2286 = vsel %vm2270, %v2228, -inf
        %v2287 = vsel %vm2271, %v2231, -inf
        %v2288 = vsel %vm2272, %v2233, -inf
        %v2289 = vsel %vm2273, %v2236, -inf
        %v2290 = vsel %vm2274, %v2238, -inf
        %v2291 = vsel %vm2275, %v2241, -inf
        %v2292 = vsel %vm2276, %v2243, -inf
        %2293 = vmax.xlane.f32.xlu0 %v2277
        %v2294 = vpop.xlane.xlu0 %2293
        %2295 = vmax.xlane.f32.xlu0 %v2278
        %v2296 = vpop.xlane.xlu0 %2295
        %2297 = vmax.xlane.f32.xlu0 %v2279
        %v2298 = vpop.xlane.xlu0 %2297
        %2299 = vmax.xlane.f32.xlu0 %v2280
        %v2300 = vpop.xlane.xlu0 %2299
        %2301 = vmax.xlane.f32.xlu0 %v2281
        %v2302 = vpop.xlane.xlu0 %2301
        %2303 = vmax.xlane.f32.xlu0 %v2282
        %v2304 = vpop.xlane.xlu0 %2303
        %2305 = vmax.xlane.f32.xlu0 %v2283
        %v2306 = vpop.xlane.xlu0 %2305
        %2307 = vmax.xlane.f32.xlu0 %v2284
        %v2308 = vpop.xlane.xlu0 %2307
        %2309 = vmax.xlane.f32.xlu0 %v2285
        %v2310 = vpop.xlane.xlu0 %2309
        %2311 = vmax.xlane.f32.xlu0 %v2286
        %v2312 = vpop.xlane.xlu0 %2311
        %2313 = vmax.xlane.f32.xlu0 %v2287
        %v2314 = vpop.xlane.xlu0 %2313
        %2315 = vmax.xlane.f32.xlu0 %v2288
        %v2316 = vpop.xlane.xlu0 %2315
        %2317 = vmax.xlane.f32.xlu0 %v2289
        %v2318 = vpop.xlane.xlu0 %2317
        %2319 = vmax.xlane.f32.xlu0 %v2290
        %v2320 = vpop.xlane.xlu0 %2319
        %2321 = vmax.xlane.f32.xlu0 %v2291
        %v2322 = vpop.xlane.xlu0 %2321
        %2323 = vmax.xlane.f32.xlu0 %v2292
        %v2324 = vpop.xlane.xlu0 %2323
        %v2325 = vsub.f32 %v2277, %v2294
        %v2326 = vsub.f32 %v2278, %v2296
        %v2327 = vsub.f32 %v2279, %v2298
        %v2328 = vsub.f32 %v2280, %v2300
        %v2329 = vsub.f32 %v2281, %v2302
        %v2330 = vsub.f32 %v2282, %v2304
        %v2331 = vsub.f32 %v2283, %v2306
        %v2332 = vsub.f32 %v2284, %v2308
        %v2333 = vsub.f32 %v2285, %v2310
        %v2334 = vsub.f32 %v2286, %v2312
        %v2335 = vsub.f32 %v2287, %v2314
        %v2336 = vsub.f32 %v2288, %v2316
        %v2337 = vsub.f32 %v2289, %v2318
        %v2338 = vsub.f32 %v2290, %v2320
        %v2339 = vsub.f32 %v2291, %v2322
        %v2340 = vsub.f32 %v2292, %v2324
        %v2341 = vmul.f32 %v2325, 1.442695
        %v2342 = vpow.pop %v2341
        %v2343 = vmul.f32 %v2326, 1.442695
        %v2344 = vpow.pop %v2343
        %v2345 = vmul.f32 %v2327, 1.442695
        %v2346 = vpow.pop %v2345
        %v2347 = vmul.f32 %v2328, 1.442695
        %v2348 = vpow.pop %v2347
        %v2349 = vmul.f32 %v2329, 1.442695
        %v2350 = vpow.pop %v2349
        %v2351 = vmul.f32 %v2330, 1.442695
        %v2352 = vpow.pop %v2351
        %v2353 = vmul.f32 %v2331, 1.442695
        %v2354 = vpow.pop %v2353
        %v2355 = vmul.f32 %v2332, 1.442695
        %v2356 = vpow.pop %v2355
        %v2357 = vmul.f32 %v2333, 1.442695
        %v2358 = vpow.pop %v2357
        %v2359 = vmul.f32 %v2334, 1.442695
        %v2360 = vpow.pop %v2359
        %v2361 = vmul.f32 %v2335, 1.442695
        %v2362 = vpow.pop %v2361
        %v2363 = vmul.f32 %v2336, 1.442695
        %v2364 = vpow.pop %v2363
        %v2365 = vmul.f32 %v2337, 1.442695
        %v2366 = vpow.pop %v2365
        %v2367 = vmul.f32 %v2338, 1.442695
        %v2368 = vpow.pop %v2367
        %v2369 = vmul.f32 %v2339, 1.442695
        %v2370 = vpow.pop %v2369
        %v2371 = vmul.f32 %v2340, 1.442695
        %v2372 = vpow.pop %v2371
        %2373 = vadd.xlane.f32.xlu0 %v2342
        %v2374 = vpop.xlane.xlu0 %2373
        %2375 = vadd.xlane.f32.xlu0 %v2344
        %v2376 = vpop.xlane.xlu0 %2375
        %2377 = vadd.xlane.f32.xlu0 %v2346
        %v2378 = vpop.xlane.xlu0 %2377
        %2379 = vadd.xlane.f32.xlu0 %v2348
        %v2380 = vpop.xlane.xlu0 %2379
        %2381 = vadd.xlane.f32.xlu0 %v2350
        %v2382 = vpop.xlane.xlu0 %2381
        %2383 = vadd.xlane.f32.xlu0 %v2352
        %v2384 = vpop.xlane.xlu0 %2383
        %2385 = vadd.xlane.f32.xlu0 %v2354
        %v2386 = vpop.xlane.xlu0 %2385
        %2387 = vadd.xlane.f32.xlu0 %v2356
        %v2388 = vpop.xlane.xlu0 %2387
        %2389 = vadd.xlane.f32.xlu0 %v2358
        %v2390 = vpop.xlane.xlu0 %2389
        %2391 = vadd.xlane.f32.xlu0 %v2360
        %v2392 = vpop.xlane.xlu0 %2391
        %2393 = vadd.xlane.f32.xlu0 %v2362
        %v2394 = vpop.xlane.xlu0 %2393
        %2395 = vadd.xlane.f32.xlu0 %v2364
        %v2396 = vpop.xlane.xlu0 %2395
        %2397 = vadd.xlane.f32.xlu0 %v2366
        %v2398 = vpop.xlane.xlu0 %2397
        %2399 = vadd.xlane.f32.xlu0 %v2368
        %v2400 = vpop.xlane.xlu0 %2399
        %2401 = vadd.xlane.f32.xlu0 %v2370
        %v2402 = vpop.xlane.xlu0 %2401
        %2403 = vadd.xlane.f32.xlu0 %v2372
        %v2404 = vpop.xlane.xlu0 %2403
        %v2405 = vrcp.pop %v2374
        %v2406 = vrcp.pop %v2376
        %v2407 = vrcp.pop %v2378
        %v2408 = vrcp.pop %v2380
        %v2409 = vrcp.pop %v2382
        %v2410 = vrcp.pop %v2384
        %v2411 = vrcp.pop %v2386
        %v2412 = vrcp.pop %v2388
        %v2413 = vrcp.pop %v2390
        %v2414 = vrcp.pop %v2392
        %v2415 = vrcp.pop %v2394
        %v2416 = vrcp.pop %v2396
        %v2417 = vrcp.pop %v2398
        %v2418 = vrcp.pop %v2400
        %v2419 = vrcp.pop %v2402
        %v2420 = vrcp.pop %v2404
        %v2421 = vmul.f32 %v2342, %v2405
        %v2422 = vmul.f32 %v2344, %v2406
        %v2423 = vmul.f32 %v2346, %v2407
        %v2424 = vmul.f32 %v2348, %v2408
        %v2425 = vmul.f32 %v2350, %v2409
        %v2426 = vmul.f32 %v2352, %v2410
        %v2427 = vmul.f32 %v2354, %v2411
        %v2428 = vmul.f32 %v2356, %v2412
        %v2429 = vmul.f32 %v2358, %v2413
        %v2430 = vmul.f32 %v2360, %v2414
        %v2431 = vmul.f32 %v2362, %v2415
        %v2432 = vmul.f32 %v2364, %v2416
        %v2433 = vmul.f32 %v2366, %v2417
        %v2434 = vmul.f32 %v2368, %v2418
        %v2435 = vmul.f32 %v2370, %v2419
        %v2436 = vmul.f32 %v2372, %v2420
        %v2437 = vpack.c.bf16 %v2421, %v2421
        %v2438 = vpack.c.bf16 %v2422, %v2422
        %v2439 = vpack.c.bf16 %v2423, %v2423
        %v2440 = vpack.c.bf16 %v2424, %v2424
        %v2441 = vpack.c.bf16 %v2425, %v2425
        %v2442 = vpack.c.bf16 %v2426, %v2426
        %v2443 = vpack.c.bf16 %v2427, %v2427
        %v2444 = vpack.c.bf16 %v2428, %v2428
        %v2445 = vpack.c.bf16 %v2429, %v2429
        %v2446 = vpack.c.bf16 %v2430, %v2430
        %v2447 = vpack.c.bf16 %v2431, %v2431
        %v2448 = vpack.c.bf16 %v2432, %v2432
        %v2449 = vpack.c.bf16 %v2433, %v2433
        %v2450 = vpack.c.bf16 %v2434, %v2434
        %v2451 = vpack.c.bf16 %v2435, %v2435
        %v2452 = vpack.c.bf16 %v2436, %v2436
        %v2461 = vunpack.c.l.b16 %v2437
        %v2462 = vunpack.c.l.b16 %v2438
        %v2463 = vunpack.c.l.b16 %v2439
        %v2464 = vunpack.c.l.b16 %v2440
        %v2465 = vunpack.c.l.b16 %v2441
        %v2466 = vunpack.c.l.b16 %v2442
        %v2467 = vunpack.c.l.b16 %v2443
        %v2468 = vunpack.c.l.b16 %v2444
        %v2469 = vpack.c.b16 %v2462, %v2461
        %v2470 = vpack.c.b16 %v2464, %v2463
        %v2471 = vpack.c.b16 %v2466, %v2465
        %v2472 = vpack.c.b16 %v2468, %v2467
        %v2477 = vunpack.c.l.b16 %v1515
        %v2478 = vunpack.c.l.b16 %v1516
        %v2479 = vunpack.c.l.b16 %v1517
        %v2480 = vunpack.c.l.b16 %v1518
        %v2481 = vunpack.c.l.b16 %v1519
        %v2482 = vunpack.c.l.b16 %v1520
        %v2483 = vunpack.c.l.b16 %v1521
        %v2484 = vunpack.c.l.b16 %v1522
        %v2485 = vpack.c.b16 %v2478, %v2477
        %v2486 = vpack.c.b16 %v2480, %v2479
        %v2487 = vpack.c.b16 %v2482, %v2481
        %v2488 = vpack.c.b16 %v2484, %v2483
        %2493 = vmatpush.bf16.msra.mxu0 %v2488
        %2494 = vmatpush.bf16.msra.mxu0 %v2487
        %2495 = vmatpush.bf16.msra.mxu0 %v2486
        %2496 = vmatpush.bf16.msra.mxu0 %v2485
        %2497 = vmatpush.bf16.msra.mxu0 %v1960
        %2498 = vmatpush.bf16.msra.mxu0 %v1959
        %2499 = vmatpush.bf16.msra.mxu0 %v1958
        %2500 = vmatpush.bf16.msra.mxu0 %v1957
        %2501 = vmatmul.bf16.gmra.mxu0 %v2469
        %v2502 = vpop.f32.mrf.mxu0
        %v2503 = vadd.f32 0.0, %v2502
        %v2504 = vpop.f32.mrf.mxu0
        %v2505 = vadd.f32 0.0, %v2504
        %2506 = vmatmul.bf16.gmra.mxu0 %v2470
        %v2507 = vpop.f32.mrf.mxu0
        %v2508 = vadd.f32 0.0, %v2507
        %v2509 = vpop.f32.mrf.mxu0
        %v2510 = vadd.f32 0.0, %v2509
        %2511 = vmatmul.bf16.gmra.mxu0 %v2471
        %v2512 = vpop.f32.mrf.mxu0
        %v2513 = vadd.f32 0.0, %v2512
        %v2514 = vpop.f32.mrf.mxu0
        %v2515 = vadd.f32 0.0, %v2514
        %2516 = vmatmul.bf16.gmra.mxu0 %v2472
        %v2517 = vpop.f32.mrf.mxu0
        %v2518 = vadd.f32 0.0, %v2517
        %v2519 = vpop.f32.mrf.mxu0
        %v2520 = vadd.f32 0.0, %v2519
        %2521 = vdwg.mxu0
        %v2530 = vunpack.c.l.b16 %v2445
        %v2531 = vunpack.c.l.b16 %v2446
        %v2532 = vunpack.c.l.b16 %v2447
        %v2533 = vunpack.c.l.b16 %v2448
        %v2534 = vunpack.c.l.b16 %v2449
        %v2535 = vunpack.c.l.b16 %v2450
        %v2536 = vunpack.c.l.b16 %v2451
        %v2537 = vunpack.c.l.b16 %v2452
        %v2538 = vpack.c.b16 %v2531, %v2530
        %v2539 = vpack.c.b16 %v2533, %v2532
        %v2540 = vpack.c.b16 %v2535, %v2534
        %v2541 = vpack.c.b16 %v2537, %v2536
        %v2546 = vunpack.c.l.b16 %v1531
        %v2547 = vunpack.c.l.b16 %v1532
        %v2548 = vunpack.c.l.b16 %v1533
        %v2549 = vunpack.c.l.b16 %v1534
        %v2550 = vunpack.c.l.b16 %v1535
        %v2551 = vunpack.c.l.b16 %v1536
        %v2552 = vunpack.c.l.b16 %v1537
        %v2553 = vunpack.c.l.b16 %v1538
        %v2554 = vpack.c.b16 %v2547, %v2546
        %v2555 = vpack.c.b16 %v2549, %v2548
        %v2556 = vpack.c.b16 %v2551, %v2550
        %v2557 = vpack.c.b16 %v2553, %v2552
        %2562 = vmatpush.bf16.msra.mxu0 %v2557
        %2563 = vmatpush.bf16.msra.mxu0 %v2556
        %2564 = vmatpush.bf16.msra.mxu0 %v2555
        %2565 = vmatpush.bf16.msra.mxu0 %v2554
        %2566 = vmatpush.bf16.msra.mxu0 %v2037
        %2567 = vmatpush.bf16.msra.mxu0 %v2036
        %2568 = vmatpush.bf16.msra.mxu0 %v2035
        %2569 = vmatpush.bf16.msra.mxu0 %v2034
        %2570 = vmatmul.bf16.gmra.mxu0 %v2538
        %v2571 = vpop.f32.mrf.mxu0
        %v2572 = vadd.f32 0.0, %v2571
        %v2573 = vpop.f32.mrf.mxu0
        %v2574 = vadd.f32 0.0, %v2573
        %2575 = vmatmul.bf16.gmra.mxu0 %v2539
        %v2576 = vpop.f32.mrf.mxu0
        %v2577 = vadd.f32 0.0, %v2576
        %v2578 = vpop.f32.mrf.mxu0
        %v2579 = vadd.f32 0.0, %v2578
        %2580 = vmatmul.bf16.gmra.mxu0 %v2540
        %v2581 = vpop.f32.mrf.mxu0
        %v2582 = vadd.f32 0.0, %v2581
        %v2583 = vpop.f32.mrf.mxu0
        %v2584 = vadd.f32 0.0, %v2583
        %2585 = vmatmul.bf16.gmra.mxu0 %v2541
        %v2586 = vpop.f32.mrf.mxu0
        %v2587 = vadd.f32 0.0, %v2586
        %v2588 = vpop.f32.mrf.mxu0
        %v2589 = vadd.f32 0.0, %v2588
        %2590 = vdwg.mxu0
        %2591 = vst.msk [vmem:[%s196 + $0x40] sm:$0xff] %vm1559, %v2503
        %2592 = vst.msk [vmem:[%s196 + $0x48] sm:$0xff] %vm1559, %v2505
        %2593 = vst.msk [vmem:[%s196 + $0x50] sm:$0xff] %vm1559, %v2508
        %2594 = vst.msk [vmem:[%s196 + $0x58] sm:$0xff] %vm1559, %v2510
        %2595 = vst.msk [vmem:[%s196 + $0x60] sm:$0xff] %vm1559, %v2513
        %2596 = vst.msk [vmem:[%s196 + $0x68] sm:$0xff] %vm1559, %v2515
        %2597 = vst.msk [vmem:[%s196 + $0x70] sm:$0xff] %vm1559, %v2518
        %2598 = vst.msk [vmem:[%s196 + $0x78] sm:$0xff] %vm1559, %v2520
        %2599 = vst.msk [vmem:[%s196 + $0xc0] sm:$0xff] %vm1559, %v2572
        %2600 = vst.msk [vmem:[%s196 + $0xc8] sm:$0xff] %vm1559, %v2574
        %2601 = vst.msk [vmem:[%s196 + $0xd0] sm:$0xff] %vm1559, %v2577
        %2602 = vst.msk [vmem:[%s196 + $0xd8] sm:$0xff] %vm1559, %v2579
        %2603 = vst.msk [vmem:[%s196 + $0xe0] sm:$0xff] %vm1559, %v2582
        %2604 = vst.msk [vmem:[%s196 + $0xe8] sm:$0xff] %vm1559, %v2584
        %2605 = vst.msk [vmem:[%s196 + $0xf0] sm:$0xff] %vm1559, %v2587
        %2606 = vst.msk [vmem:[%s196 + $0xf8] sm:$0xff] %vm1559, %v2589
        %s2607 = smul.u32 2, %s17
        %p2608 = scmp.lt.s32.totalorder %s2607, 3
        %s2609 = scalar_select %p2608, %s2607, 3
        %s2610 = smul.addr %s2609, 16
        %s2611 = smul.addr %s2610, 8
        %s2612 = scalar_lea.vmem %s3, %s2611
        // Predicated region
        $region37: #{tpu_custom_call.1} parent=31 // pred_check
          %p2613 = pneg %p103
        $region38: #{tpu_custom_call.1} parent=31 // pred_check_branch
          %2615 = sbr.rel (%p2613) target = $region40
        $region39: #{tpu_custom_call.1} parent=31 // pred_region
          %s2616 = smul.u32 2, %s17
        $region40: #{tpu_custom_call.1} parent=31 // pred_fallthru
          _
      $region32: #{tpu_custom_call.1} parent=5 // pred_fallthru
        _
      %p2617 = scmp.le.s32.totalorder 2, %s12
      // Predicated region
      $region41: #{tpu_custom_call.1} parent=5 // pred_check
        %p2618 = pneg %p2617
      $region42: #{tpu_custom_call.1} parent=5 // pred_check_branch
        %2620 = sbr.rel (%p2618) target = $region44
      $region43: #{tpu_custom_call.1} parent=5 // pred_region
        %s2621 = ssub.s32 %s12, 2
        // Predicated region
        $region45: #{tpu_custom_call.1} parent=43 // pred_check
          %p2622 = pneg %p109
        $region46: #{tpu_custom_call.1} parent=43 // pred_check_branch
          %2624 = sbr.rel (%p2622) target = $region48
        $region47: #{tpu_custom_call.1} parent=43 // pred_region
          %s2625 = smul.u32 2, %s18
          %p2626 = scmp.lt.s32.totalorder %s2625, 3
          %s2627 = scalar_select %p2626, %s2625, 3
          %s2628 = smul.addr %s2627, 16
          %s2629 = smul.addr %s2628, 8
          %s2630 = scalar_lea.vmem %s3, %s2629
        $region48: #{tpu_custom_call.1} parent=43 // pred_fallthru
          _
      $region44: #{tpu_custom_call.1} parent=5 // pred_fallthru
        _
    $region6: #{tpu_custom_call.1} parent=1 // loop_footer
      %s16 = sadd.s32 1, %s12
    $region7: #{tpu_custom_call.1} parent=1 // loop_footer_branch
      %11 = sbr.rel target = $region3
    $region8: #{tpu_custom_call.1} parent=1 // loop_exit
      _
    %2631 = vsyncpa [#allocation3], 1
    %s2632 = scalar_lea.sflag [#allocation3], 1
    %2633 = vsyncpa %s2632, 1

</llo_original>
